<compile_context>
chip_gen: v5e
topology: v5e:2x2
jax: 0.10.0
libtpu: 0.0.40
codegen_flags: <defaults>
</compile_context>

<pallas_src>
import functools

import numpy as np

import jax
import jax.numpy as jnp
from jax import lax
from jax.experimental import pallas as pl
from jax.experimental.pallas import tpu as pltpu


BLOCK = 128            # lane block; every packed weight block is 128-lane aligned
W_COLS = 4 * BLOCK     # [ Wg | Wl | Wg@att_dst | Wg@att_src ]


# ------------------------- in-kernel helpers -------------------------------

def _leaky_relu(x, slope=0.2):
    return jnp.where(x > 0, x, slope * x)


# ------------------------------ fused kernel --------------------------------

def fused_net_kernel(*refs, cfgs):
    """Whole Net forward in one kernel (no grid; everything VMEM resident).

    refs layout:
      refs[0]  x_ref     [N, F]       f32  node features
      refs[1]  ladj_ref  [N, N]       f32  ln(edge multiplicity) on edges (incl.
                                           the single self loop), -1e30 off-edge
      per layer l:
        w_ref    [Fin_p, 512]  bf16   [Wg | Wl | Wg@att_dst | Wg@att_src]
        b_ref    [1, 128]      f32    GATConv bias + Linear bias (zero padded)
        mask_ref [H*N, 128]    f32    0/1 head-ownership mask for the stacked agg
        fold_ref [128, 128]    bf16   (non-concat layers only) head-mean fold
      refs[-1] out_ref   [N, 128]     f32  lane-dense output slab
    """
    x_ref, ladj_ref = refs[0], refs[1]
    out_ref = refs[-1]
    n = x_ref.shape[0]
    log_adj = ladj_ref[...]                                     # [N, N] f32

    # Hoisted: sublane-tiled adjacency per distinct head count (built once).
    tiled_adj = {}
    for heads, _, _, _ in cfgs:
        if heads not in tiled_adj:
            tiled_adj[heads] = jnp.concatenate([log_adj] * heads, axis=0)

    def gat_linear_layer(x, w_ref, b_ref, mask_ref, fold_ref, ladj_t,
                         heads, concat, apply_elu):
        x_bf = x.astype(jnp.bfloat16)

        # ONE wide MXU push per layer; every slice below is a whole-vreg
        # 128-lane block (no sub-vreg lane extracts).
        proj = jnp.dot(x_bf, w_ref[...], preferred_element_type=jnp.float32)
        xp = proj[:, 0 * BLOCK:1 * BLOCK]     # [N,128] GAT projection (cols>=H*C are 0)
        lin = proj[:, 1 * BLOCK:2 * BLOCK]    # [N,128] Linear skip
        s_dst = proj[:, 2 * BLOCK:3 * BLOCK]  # [N,128] col h: dst attention logits
        s_src = proj[:, 3 * BLOCK:4 * BLOCK]  # [N,128] col h: src attention logits
        xp_bf = xp.astype(jnp.bfloat16)

        # Only the tiny logit slab is transposed (cheap XLU), never xp itself.
        s_srcT = s_src.T                                        # [128, N]

        # Sublane-stack all heads' logits -> ONE softmax per layer.
        e = jnp.concatenate(
            [s_dst[:, h:h + 1] + s_srcT[h:h + 1, :] for h in range(heads)],
            axis=0)                                             # [H*N, N]
        e = _leaky_relu(e) + ladj_t
        m = jnp.max(e, axis=-1, keepdims=True)                  # ONE reduce
        p = jnp.exp(e - m)                                      # ONE EUP pass; 0 off-edge
        denom = jnp.sum(p, axis=-1, keepdims=True)              # ONE reduce
        alpha = (p * pl.reciprocal(denom, approx=True)).astype(jnp.bfloat16)

        # ONE aggregation matmul for all heads (128/192 MXU rows), then keep
        # each head's own columns and collapse the head blocks (aligned slices).
        agg = jnp.dot(alpha, xp_bf, preferred_element_type=jnp.float32)  # [H*N,128]
        agg = agg * mask_ref[...]
        gat = agg[0:n, :]
        for h in range(1, heads):
            gat = gat + agg[h * n:(h + 1) * n, :]               # [N, 128]

        if not concat:
            # Head mean via one 0/1 fold matmul (keeps all lanes 128-aligned).
            gat = jnp.dot(gat.astype(jnp.bfloat16), fold_ref[...],
                          preferred_element_type=jnp.float32) * (1.0 / heads)

        y = gat + lin + b_ref[...]
        if apply_elu:
            # exp(y)-1 instead of expm1: guaranteed Mosaic lowering, same cost.
            y = jnp.where(y > 0, y, jnp.exp(y) - 1.0)
        return y

    y = x_ref[...]
    pos = 2
    for heads, _out_ch, concat, apply_elu in cfgs:
        w_ref, b_ref, mask_ref = refs[pos], refs[pos + 1], refs[pos + 2]
        pos += 3
        fold_ref = None
        if not concat:
            fold_ref = refs[pos]
            pos += 1
        y = gat_linear_layer(y, w_ref, b_ref, mask_ref, fold_ref,
                             tiled_adj[heads], heads, concat, apply_elu)

    out_ref[...] = y                     # single unmasked lane-dense vst


# ------------------------------ wrapper --------------------------------------

def _build_log_adj(edge_index, n):
    """ln(edge multiplicity) for j->i edges (+ one self loop per node),
    -1e30 for non-edges.  Matches PyG GATConv(add_self_loops=True) and handles
    duplicate edges exactly.  Graph-static: compute ONCE, outside the forward."""
    src, dst = edge_index[0], edge_index[1]
    counts = jnp.zeros((n, n), jnp.float32).at[dst, src].add(1.0)
    eye = jnp.eye(n, dtype=jnp.float32)
    counts = counts * (1.0 - eye) + eye       # exactly one self loop per node
    safe = jnp.where(counts > 0, counts, 1.0)
    return jnp.where(counts > 0, jnp.log(safe), jnp.float32(-1e30))


def _head_mask(n, heads, out_ch):
    """0/1 mask [H*N, 128]: row block h keeps only columns of head h."""
    r = np.arange(heads * n, dtype=np.int64)[:, None] // n
    c = np.arange(BLOCK, dtype=np.int64)[None, :] // out_ch
    return jnp.asarray((r == c).astype(np.float32))


def net_forward(prep_params, x, log_adj, *, layer_cfgs, num_classes):
    n = x.shape[0]
    args = [x.astype(jnp.float32), log_adj.astype(jnp.float32)]
    for layer_params, (heads, out_ch, concat, _elu) in zip(prep_params, layer_cfgs):
        args += [layer_params[0], layer_params[1], _head_mask(n, heads, out_ch)]
        if not concat:
            args.append(layer_params[2])            # fold matrix

    kernel = functools.partial(fused_net_kernel, cfgs=tuple(layer_cfgs))
    out = pl.pallas_call(
        kernel,
        out_shape=jax.ShapeDtypeStruct((n, BLOCK), jnp.float32),
        in_specs=[pl.BlockSpec(memory_space=pltpu.MemorySpace.VMEM)
                  for _ in args],
        out_specs=pl.BlockSpec(memory_space=pltpu.MemorySpace.VMEM),
    )(*args)
    return out[:, :num_classes]


# --------------------------- parameters --------------------------------------

def _glorot(key, shape):
    fan_in, fan_out = shape[0], shape[-1]
    lim = (6.0 / (fan_in + fan_out)) ** 0.5
    return jax.random.uniform(key, shape, jnp.float32, -lim, lim)


def init_net_params(key, num_features, num_classes, value=10):
    """Torch-layout parameters (weights pre-transposed so matmuls are x @ W)."""
    hid = 4 * value
    ks = jax.random.split(key, 12)
    return {
        # conv1: GATConv(F, value, heads=4), lin1: Linear(F, 4*value)
        "layer1": (_glorot(ks[0], (num_features, 4 * value)),
                   _glorot(ks[1], (4, value)),
                   _glorot(ks[2], (4, value)),
                   jnp.zeros((1, 4 * value), jnp.float32),
                   _glorot(ks[3], (num_features, hid)),
                   jnp.zeros((1, hid), jnp.float32)),
        # conv2: GATConv(40, value, heads=4), lin2: Linear(40, 40)
        "layer2": (_glorot(ks[4], (hid, 4 * value)),
                   _glorot(ks[5], (4, value)),
                   _glorot(ks[6], (4, value)),
                   jnp.zeros((1, 4 * value), jnp.float32),
                   _glorot(ks[7], (hid, hid)),
                   jnp.zeros((1, hid), jnp.float32)),
        # conv3: GATConv(40, C, heads=6, concat=False), lin3: Linear(40, C)
        "layer3": (_glorot(ks[8], (hid, 6 * num_classes)),
                   _glorot(ks[9], (6, num_classes)),
                   _glorot(ks[10], (6, num_classes)),
                   jnp.zeros((1, num_classes), jnp.float32),
                   _glorot(ks[11], (hid, num_classes)),
                   jnp.zeros((1, num_classes), jnp.float32)),
    }


def prepare_net_params(raw_params, layer_cfgs):
    """One-time fold of torch-style params into the fused-kernel layout:
    packed [Wg | Wl | Wg@att_dst | Wg@att_src] in bf16 with every block padded
    to 128 lanes, summed + padded bias, and (non-concat only) a 0/1 fold matrix
    for the head mean."""
    prepared = []
    names = ("layer1", "layer2", "layer3")
    for idx, (name, (heads, out_ch, concat, _elu)) in enumerate(zip(names, layer_cfgs)):
        wg, asrc, adst, bg, bl_w, bl = (np.asarray(a, np.float32)
                                        for a in raw_params[name])
        wl = bl_w
        fin = wg.shape[0]
        hc = heads * out_ch
        dout = wl.shape[1]
        assert asrc.shape == (heads, out_ch) and adst.shape == (heads, out_ch)
        assert hc <= BLOCK and dout <= BLOCK and heads <= BLOCK

        # att_src / att_dst folded through Wg at prep time:
        #   a_dst[:, h] = Wg[:, hC:(h+1)C] @ adst[h]   (same for src)
        a_dst = np.zeros((fin, BLOCK), np.float32)
        a_src = np.zeros((fin, BLOCK), np.float32)
        for h in range(heads):
            a_dst[:, h] = wg[:, h * out_ch:(h + 1) * out_ch] @ adst[h]
            a_src[:, h] = wg[:, h * out_ch:(h + 1) * out_ch] @ asrc[h]

        # Layers 2/3 consume the previous layer's [N, 128] slab -> pad rows.
        fin_pad = fin if idx == 0 else BLOCK
        w_all = np.zeros((fin_pad, W_COLS), np.float32)
        w_all[:fin, 0 * BLOCK:0 * BLOCK + hc] = wg
        w_all[:fin, 1 * BLOCK:1 * BLOCK + dout] = wl
        w_all[:fin, 2 * BLOCK:3 * BLOCK] = a_dst
        w_all[:fin, 3 * BLOCK:4 * BLOCK] = a_src

        bias = np.zeros((1, BLOCK), np.float32)
        bias[0, :dout] = (bg + bl).reshape(-1)

        layer = [jnp.asarray(w_all, jnp.bfloat16),
                 jnp.asarray(bias, jnp.float32)]
        if not concat:
            fold = np.zeros((BLOCK, BLOCK), np.float32)
            for h in range(heads):
                fold[h * out_ch:(h + 1) * out_ch, :out_ch] = np.eye(out_ch)
            layer.append(jnp.asarray(fold, jnp.bfloat16))
        prepared.append(tuple(layer))
    return tuple(prepared)


# --------------------------- pure-JAX reference -------------------------------

def reference_forward(raw_params, x, edge_index, *, layer_cfgs):
    n = x.shape[0]
    log_adj = _build_log_adj(edge_index, n)
    names = ("layer1", "layer2", "layer3")
    for name, (heads, out_ch, concat, apply_elu) in zip(names, layer_cfgs):
        wg, asrc, adst, bg, wl, bl = raw_params[name]
        xp = (x @ wg).reshape(n, heads, out_ch)
        a_src = jnp.einsum("nhc,hc->hn", xp, asrc)          # [H, N]
        a_dst = jnp.einsum("nhc,hc->hn", xp, adst)          # [H, N]
        logits = a_dst[:, :, None] + a_src[:, None, :]
        e = jnp.where(logits > 0, logits, 0.2 * logits) + log_adj[None]
        alpha = jax.nn.softmax(e, axis=-1)                  # [H, N(i), N(j)]
        agg = jnp.einsum("hij,jhc->ihc", alpha, xp)         # [N, H, C]
        gat = agg.reshape(n, heads * out_ch) if concat else agg.mean(axis=1)
        y = gat + bg + x @ wl + bl
        x = jnp.where(y > 0, y, jnp.exp(y) - 1.0) if apply_elu else y
    return x


# --------------------------------- main --------------------------------------

if __name__ == "__main__":
    NUM_NODES = 32
    NUM_FEATURES = 32     # stand-in for train_dataset.num_features
    NUM_CLASSES = 16      # stand-in for train_dataset.num_classes
    NUM_EDGES = 96
    VALUE = 10            # `value` from the reference module

    key = jax.random.PRNGKey(0)
    kx, ksrc, kdst, kparams = jax.random.split(key, 4)

    x = jax.random.normal(kx, (NUM_NODES, NUM_FEATURES), jnp.float32)
    src = jax.random.randint(ksrc, (NUM_EDGES,), 0, NUM_NODES, jnp.int32)
    dst = jax.random.randint(kdst, (NUM_EDGES,), 0, NUM_NODES, jnp.int32)
    edge_index = jnp.stack([src, dst], axis=0)              # [2, E]

    # (heads, out_ch, concat, apply_elu) per layer — matches the torch module.
    cfgs = ((4, VALUE, True, True),
            (4, VALUE, True, True),
            (6, NUM_CLASSES, False, False))

    raw_params = init_net_params(kparams, NUM_FEATURES, NUM_CLASSES, VALUE)
    prep_params = prepare_net_params(raw_params, cfgs)

    # Graph-static dense log-adjacency computed ONCE, outside the forward path.
    log_adj = jax.block_until_ready(_build_log_adj(edge_index, NUM_NODES))

    fwd = jax.jit(functools.partial(net_forward, layer_cfgs=cfgs,
                                    num_classes=NUM_CLASSES))
    out = jax.block_until_ready(fwd(prep_params, x, log_adj))

    assert out.shape == (NUM_NODES, NUM_CLASSES)
    assert out.dtype == jnp.float32
    assert bool(jnp.all(jnp.isfinite(out)))

    # f32 pure-JAX reference; the kernel feeds the MXU in bf16 and uses an
    # approx reciprocal in the softmax, so use a loose tolerance.
    ref = reference_forward(raw_params, x, edge_index, layer_cfgs=cfgs)
    max_err = float(jnp.max(jnp.abs(out - ref)))
    scale = float(jnp.max(jnp.abs(ref)))
    assert max_err <= 0.15 * scale + 0.15, f"kernel/reference mismatch: {max_err}"

    print("KERNEL_OK")
</pallas_src>

<mosaic_0001>
module attributes {stable_mosaic.version = 11 : i64} {
  func.func @fused_net_kernel(%arg0: memref<32x32xf32, #tpu.memory_space<vmem>>, %arg1: memref<32x32xf32, #tpu.memory_space<vmem>>, %arg2: memref<32x512xbf16, #tpu.memory_space<vmem>>, %arg3: memref<1x128xf32, #tpu.memory_space<vmem>>, %arg4: memref<128x128xf32, #tpu.memory_space<vmem>>, %arg5: memref<128x512xbf16, #tpu.memory_space<vmem>>, %arg6: memref<1x128xf32, #tpu.memory_space<vmem>>, %arg7: memref<128x128xf32, #tpu.memory_space<vmem>>, %arg8: memref<128x512xbf16, #tpu.memory_space<vmem>>, %arg9: memref<1x128xf32, #tpu.memory_space<vmem>>, %arg10: memref<192x128xf32, #tpu.memory_space<vmem>>, %arg11: memref<128x128xbf16, #tpu.memory_space<vmem>>, %arg12: memref<32x128xf32, #tpu.memory_space<vmem>>) attributes {dimension_semantics = [], scalar_prefetch = 0 : i64, scratch_operands = 0 : i64, tpu.core_type = #tpu.core_type<tc>} {
    %c0 = arith.constant 0 : index
    %c0_0 = arith.constant 0 : index
    %0 = vector.load %arg1[%c0, %c0_0] : memref<32x32xf32, #tpu.memory_space<vmem>>, vector<32x32xf32>
    %1 = tpu.concatenate %0, %0, %0, %0 in 0 : vector<32x32xf32>, vector<32x32xf32>, vector<32x32xf32>, vector<32x32xf32> -> vector<128x32xf32>
    %2 = tpu.concatenate %0, %0, %0, %0, %0, %0 in 0 : vector<32x32xf32>, vector<32x32xf32>, vector<32x32xf32>, vector<32x32xf32>, vector<32x32xf32>, vector<32x32xf32> -> vector<192x32xf32>
    %c0_1 = arith.constant 0 : index
    %c0_2 = arith.constant 0 : index
    %3 = vector.load %arg0[%c0_1, %c0_2] : memref<32x32xf32, #tpu.memory_space<vmem>>, vector<32x32xf32>
    %4 = arith.truncf %3 : vector<32x32xf32> to vector<32x32xbf16>
    %c0_3 = arith.constant 0 : index
    %c0_4 = arith.constant 0 : index
    %5 = vector.load %arg2[%c0_3, %c0_4] : memref<32x512xbf16, #tpu.memory_space<vmem>>, vector<32x512xbf16>
    %cst = arith.constant dense<0.000000e+00> : vector<32x512xf32>
    %6 = tpu.matmul %4, %5, %cst {dimension_numbers = #tpu.dot_dimension_numbers<[1], [0], [0], [1], [0, 0, 1, 1], [], []>} : vector<32x32xbf16>, vector<32x512xbf16>, vector<32x512xf32> -> vector<32x512xf32>
    %7 = vector.extract_strided_slice %6 {offsets = [0, 0], sizes = [32, 128], strides = [1, 1]} : vector<32x512xf32> to vector<32x128xf32>
    %8 = vector.extract_strided_slice %6 {offsets = [0, 128], sizes = [32, 128], strides = [1, 1]} : vector<32x512xf32> to vector<32x128xf32>
    %9 = vector.extract_strided_slice %6 {offsets = [0, 256], sizes = [32, 128], strides = [1, 1]} : vector<32x512xf32> to vector<32x128xf32>
    %10 = vector.extract_strided_slice %6 {offsets = [0, 384], sizes = [32, 128], strides = [1, 1]} : vector<32x512xf32> to vector<32x128xf32>
    %11 = arith.truncf %7 : vector<32x128xf32> to vector<32x128xbf16>
    %12 = tpu.transpose %10, [1, 0] : vector<32x128xf32> -> vector<128x32xf32>
    %13 = vector.extract_strided_slice %9 {offsets = [0, 0], sizes = [32, 1], strides = [1, 1]} : vector<32x128xf32> to vector<32x1xf32>
    %14 = vector.extract_strided_slice %12 {offsets = [0, 0], sizes = [1, 32], strides = [1, 1]} : vector<128x32xf32> to vector<1x32xf32>
    %15 = vector.broadcast %13 : vector<32x1xf32> to vector<32x32xf32>
    %16 = vector.broadcast %14 : vector<1x32xf32> to vector<32x32xf32>
    %17 = arith.addf %15, %16 : vector<32x32xf32>
    %18 = vector.extract_strided_slice %9 {offsets = [0, 1], sizes = [32, 1], strides = [1, 1]} : vector<32x128xf32> to vector<32x1xf32>
    %19 = vector.extract_strided_slice %12 {offsets = [1, 0], sizes = [1, 32], strides = [1, 1]} : vector<128x32xf32> to vector<1x32xf32>
    %20 = vector.broadcast %18 : vector<32x1xf32> to vector<32x32xf32>
    %21 = vector.broadcast %19 : vector<1x32xf32> to vector<32x32xf32>
    %22 = arith.addf %20, %21 : vector<32x32xf32>
    %23 = vector.extract_strided_slice %9 {offsets = [0, 2], sizes = [32, 1], strides = [1, 1]} : vector<32x128xf32> to vector<32x1xf32>
    %24 = vector.extract_strided_slice %12 {offsets = [2, 0], sizes = [1, 32], strides = [1, 1]} : vector<128x32xf32> to vector<1x32xf32>
    %25 = vector.broadcast %23 : vector<32x1xf32> to vector<32x32xf32>
    %26 = vector.broadcast %24 : vector<1x32xf32> to vector<32x32xf32>
    %27 = arith.addf %25, %26 : vector<32x32xf32>
    %28 = vector.extract_strided_slice %9 {offsets = [0, 3], sizes = [32, 1], strides = [1, 1]} : vector<32x128xf32> to vector<32x1xf32>
    %29 = vector.extract_strided_slice %12 {offsets = [3, 0], sizes = [1, 32], strides = [1, 1]} : vector<128x32xf32> to vector<1x32xf32>
    %30 = vector.broadcast %28 : vector<32x1xf32> to vector<32x32xf32>
    %31 = vector.broadcast %29 : vector<1x32xf32> to vector<32x32xf32>
    %32 = arith.addf %30, %31 : vector<32x32xf32>
    %33 = tpu.concatenate %17, %22, %27, %32 in 0 : vector<32x32xf32>, vector<32x32xf32>, vector<32x32xf32>, vector<32x32xf32> -> vector<128x32xf32>
    %cst_5 = arith.constant 0.000000e+00 : f32
    %34 = vector.broadcast %cst_5 : f32 to vector<128x32xf32>
    %35 = arith.cmpf ogt, %33, %34 : vector<128x32xf32>
    %cst_6 = arith.constant 2.000000e-01 : f32
    %36 = vector.broadcast %cst_6 : f32 to vector<128x32xf32>
    %37 = arith.mulf %36, %33 : vector<128x32xf32>
    %38 = arith.select %35, %33, %37 : vector<128x32xi1>, vector<128x32xf32>
    %39 = arith.addf %38, %1 : vector<128x32xf32>
    %cst_7 = arith.constant dense<0xFF800000> : vector<128xf32>
    %40 = vector.multi_reduction <maximumf>, %39, %cst_7 [1] : vector<128x32xf32> to vector<128xf32>
    %41 = vector.shape_cast %40 : vector<128xf32> to vector<128x1xf32>
    %42 = vector.broadcast %41 : vector<128x1xf32> to vector<128x32xf32>
    %43 = arith.subf %39, %42 : vector<128x32xf32>
    %44 = math.exp %43 : vector<128x32xf32>
    %cst_8 = arith.constant dense<0.000000e+00> : vector<128xf32>
    %45 = vector.multi_reduction <add>, %44, %cst_8 [1] : vector<128x32xf32> to vector<128xf32>
    %46 = vector.shape_cast %45 : vector<128xf32> to vector<128x1xf32>
    %47 = tpu.reciprocal %46 {approx = true} : vector<128x1xf32> -> vector<128x1xf32>
    %48 = vector.broadcast %47 : vector<128x1xf32> to vector<128x32xf32>
    %49 = arith.mulf %44, %48 : vector<128x32xf32>
    %50 = arith.truncf %49 : vector<128x32xf32> to vector<128x32xbf16>
    %cst_9 = arith.constant dense<0.000000e+00> : vector<128x128xf32>
    %51 = tpu.matmul %50, %11, %cst_9 {dimension_numbers = #tpu.dot_dimension_numbers<[1], [0], [0], [1], [0, 0, 1, 1], [], []>} : vector<128x32xbf16>, vector<32x128xbf16>, vector<128x128xf32> -> vector<128x128xf32>
    %c0_10 = arith.constant 0 : index
    %c0_11 = arith.constant 0 : index
    %52 = vector.load %arg4[%c0_10, %c0_11] : memref<128x128xf32, #tpu.memory_space<vmem>>, vector<128x128xf32>
    %53 = arith.mulf %51, %52 : vector<128x128xf32>
    %54 = vector.extract_strided_slice %53 {offsets = [0, 0], sizes = [32, 128], strides = [1, 1]} : vector<128x128xf32> to vector<32x128xf32>
    %55 = vector.extract_strided_slice %53 {offsets = [32, 0], sizes = [32, 128], strides = [1, 1]} : vector<128x128xf32> to vector<32x128xf32>
    %56 = arith.addf %54, %55 : vector<32x128xf32>
    %57 = vector.extract_strided_slice %53 {offsets = [64, 0], sizes = [32, 128], strides = [1, 1]} : vector<128x128xf32> to vector<32x128xf32>
    %58 = arith.addf %56, %57 : vector<32x128xf32>
    %59 = vector.extract_strided_slice %53 {offsets = [96, 0], sizes = [32, 128], strides = [1, 1]} : vector<128x128xf32> to vector<32x128xf32>
    %60 = arith.addf %58, %59 : vector<32x128xf32>
    %61 = arith.addf %60, %8 : vector<32x128xf32>
    %c0_12 = arith.constant 0 : index
    %c0_13 = arith.constant 0 : index
    %62 = vector.load %arg3[%c0_12, %c0_13] : memref<1x128xf32, #tpu.memory_space<vmem>>, vector<1x128xf32>
    %63 = vector.broadcast %62 : vector<1x128xf32> to vector<32x128xf32>
    %64 = arith.addf %61, %63 : vector<32x128xf32>
    %cst_14 = arith.constant 0.000000e+00 : f32
    %65 = vector.broadcast %cst_14 : f32 to vector<32x128xf32>
    %66 = arith.cmpf ogt, %64, %65 : vector<32x128xf32>
    %67 = math.exp %64 : vector<32x128xf32>
    %cst_15 = arith.constant 1.000000e+00 : f32
    %68 = vector.broadcast %cst_15 : f32 to vector<32x128xf32>
    %69 = arith.subf %67, %68 : vector<32x128xf32>
    %70 = arith.select %66, %64, %69 : vector<32x128xi1>, vector<32x128xf32>
    %71 = arith.truncf %70 : vector<32x128xf32> to vector<32x128xbf16>
    %c0_16 = arith.constant 0 : index
    %c0_17 = arith.constant 0 : index
    %72 = vector.load %arg5[%c0_16, %c0_17] : memref<128x512xbf16, #tpu.memory_space<vmem>>, vector<128x512xbf16>
    %cst_18 = arith.constant dense<0.000000e+00> : vector<32x512xf32>
    %73 = tpu.matmul %71, %72, %cst_18 {dimension_numbers = #tpu.dot_dimension_numbers<[1], [0], [0], [1], [0, 0, 1, 1], [], []>} : vector<32x128xbf16>, vector<128x512xbf16>, vector<32x512xf32> -> vector<32x512xf32>
    %74 = vector.extract_strided_slice %73 {offsets = [0, 0], sizes = [32, 128], strides = [1, 1]} : vector<32x512xf32> to vector<32x128xf32>
    %75 = vector.extract_strided_slice %73 {offsets = [0, 128], sizes = [32, 128], strides = [1, 1]} : vector<32x512xf32> to vector<32x128xf32>
    %76 = vector.extract_strided_slice %73 {offsets = [0, 256], sizes = [32, 128], strides = [1, 1]} : vector<32x512xf32> to vector<32x128xf32>
    %77 = vector.extract_strided_slice %73 {offsets = [0, 384], sizes = [32, 128], strides = [1, 1]} : vector<32x512xf32> to vector<32x128xf32>
    %78 = arith.truncf %74 : vector<32x128xf32> to vector<32x128xbf16>
    %79 = tpu.transpose %77, [1, 0] : vector<32x128xf32> -> vector<128x32xf32>
    %80 = vector.extract_strided_slice %76 {offsets = [0, 0], sizes = [32, 1], strides = [1, 1]} : vector<32x128xf32> to vector<32x1xf32>
    %81 = vector.extract_strided_slice %79 {offsets = [0, 0], sizes = [1, 32], strides = [1, 1]} : vector<128x32xf32> to vector<1x32xf32>
    %82 = vector.broadcast %80 : vector<32x1xf32> to vector<32x32xf32>
    %83 = vector.broadcast %81 : vector<1x32xf32> to vector<32x32xf32>
    %84 = arith.addf %82, %83 : vector<32x32xf32>
    %85 = vector.extract_strided_slice %76 {offsets = [0, 1], sizes = [32, 1], strides = [1, 1]} : vector<32x128xf32> to vector<32x1xf32>
    %86 = vector.extract_strided_slice %79 {offsets = [1, 0], sizes = [1, 32], strides = [1, 1]} : vector<128x32xf32> to vector<1x32xf32>
    %87 = vector.broadcast %85 : vector<32x1xf32> to vector<32x32xf32>
    %88 = vector.broadcast %86 : vector<1x32xf32> to vector<32x32xf32>
    %89 = arith.addf %87, %88 : vector<32x32xf32>
    %90 = vector.extract_strided_slice %76 {offsets = [0, 2], sizes = [32, 1], strides = [1, 1]} : vector<32x128xf32> to vector<32x1xf32>
    %91 = vector.extract_strided_slice %79 {offsets = [2, 0], sizes = [1, 32], strides = [1, 1]} : vector<128x32xf32> to vector<1x32xf32>
    %92 = vector.broadcast %90 : vector<32x1xf32> to vector<32x32xf32>
    %93 = vector.broadcast %91 : vector<1x32xf32> to vector<32x32xf32>
    %94 = arith.addf %92, %93 : vector<32x32xf32>
    %95 = vector.extract_strided_slice %76 {offsets = [0, 3], sizes = [32, 1], strides = [1, 1]} : vector<32x128xf32> to vector<32x1xf32>
    %96 = vector.extract_strided_slice %79 {offsets = [3, 0], sizes = [1, 32], strides = [1, 1]} : vector<128x32xf32> to vector<1x32xf32>
    %97 = vector.broadcast %95 : vector<32x1xf32> to vector<32x32xf32>
    %98 = vector.broadcast %96 : vector<1x32xf32> to vector<32x32xf32>
    %99 = arith.addf %97, %98 : vector<32x32xf32>
    %100 = tpu.concatenate %84, %89, %94, %99 in 0 : vector<32x32xf32>, vector<32x32xf32>, vector<32x32xf32>, vector<32x32xf32> -> vector<128x32xf32>
    %cst_19 = arith.constant 0.000000e+00 : f32
    %101 = vector.broadcast %cst_19 : f32 to vector<128x32xf32>
    %102 = arith.cmpf ogt, %100, %101 : vector<128x32xf32>
    %cst_20 = arith.constant 2.000000e-01 : f32
    %103 = vector.broadcast %cst_20 : f32 to vector<128x32xf32>
    %104 = arith.mulf %103, %100 : vector<128x32xf32>
    %105 = arith.select %102, %100, %104 : vector<128x32xi1>, vector<128x32xf32>
    %106 = arith.addf %105, %1 : vector<128x32xf32>
    %cst_21 = arith.constant dense<0xFF800000> : vector<128xf32>
    %107 = vector.multi_reduction <maximumf>, %106, %cst_21 [1] : vector<128x32xf32> to vector<128xf32>
    %108 = vector.shape_cast %107 : vector<128xf32> to vector<128x1xf32>
    %109 = vector.broadcast %108 : vector<128x1xf32> to vector<128x32xf32>
    %110 = arith.subf %106, %109 : vector<128x32xf32>
    %111 = math.exp %110 : vector<128x32xf32>
    %cst_22 = arith.constant dense<0.000000e+00> : vector<128xf32>
    %112 = vector.multi_reduction <add>, %111, %cst_22 [1] : vector<128x32xf32> to vector<128xf32>
    %113 = vector.shape_cast %112 : vector<128xf32> to vector<128x1xf32>
    %114 = tpu.reciprocal %113 {approx = true} : vector<128x1xf32> -> vector<128x1xf32>
    %115 = vector.broadcast %114 : vector<128x1xf32> to vector<128x32xf32>
    %116 = arith.mulf %111, %115 : vector<128x32xf32>
    %117 = arith.truncf %116 : vector<128x32xf32> to vector<128x32xbf16>
    %cst_23 = arith.constant dense<0.000000e+00> : vector<128x128xf32>
    %118 = tpu.matmul %117, %78, %cst_23 {dimension_numbers = #tpu.dot_dimension_numbers<[1], [0], [0], [1], [0, 0, 1, 1], [], []>} : vector<128x32xbf16>, vector<32x128xbf16>, vector<128x128xf32> -> vector<128x128xf32>
    %c0_24 = arith.constant 0 : index
    %c0_25 = arith.constant 0 : index
    %119 = vector.load %arg7[%c0_24, %c0_25] : memref<128x128xf32, #tpu.memory_space<vmem>>, vector<128x128xf32>
    %120 = arith.mulf %118, %119 : vector<128x128xf32>
    %121 = vector.extract_strided_slice %120 {offsets = [0, 0], sizes = [32, 128], strides = [1, 1]} : vector<128x128xf32> to vector<32x128xf32>
    %122 = vector.extract_strided_slice %120 {offsets = [32, 0], sizes = [32, 128], strides = [1, 1]} : vector<128x128xf32> to vector<32x128xf32>
    %123 = arith.addf %121, %122 : vector<32x128xf32>
    %124 = vector.extract_strided_slice %120 {offsets = [64, 0], sizes = [32, 128], strides = [1, 1]} : vector<128x128xf32> to vector<32x128xf32>
    %125 = arith.addf %123, %124 : vector<32x128xf32>
    %126 = vector.extract_strided_slice %120 {offsets = [96, 0], sizes = [32, 128], strides = [1, 1]} : vector<128x128xf32> to vector<32x128xf32>
    %127 = arith.addf %125, %126 : vector<32x128xf32>
    %128 = arith.addf %127, %75 : vector<32x128xf32>
    %c0_26 = arith.constant 0 : index
    %c0_27 = arith.constant 0 : index
    %129 = vector.load %arg6[%c0_26, %c0_27] : memref<1x128xf32, #tpu.memory_space<vmem>>, vector<1x128xf32>
    %130 = vector.broadcast %129 : vector<1x128xf32> to vector<32x128xf32>
    %131 = arith.addf %128, %130 : vector<32x128xf32>
    %cst_28 = arith.constant 0.000000e+00 : f32
    %132 = vector.broadcast %cst_28 : f32 to vector<32x128xf32>
    %133 = arith.cmpf ogt, %131, %132 : vector<32x128xf32>
    %134 = math.exp %131 : vector<32x128xf32>
    %cst_29 = arith.constant 1.000000e+00 : f32
    %135 = vector.broadcast %cst_29 : f32 to vector<32x128xf32>
    %136 = arith.subf %134, %135 : vector<32x128xf32>
    %137 = arith.select %133, %131, %136 : vector<32x128xi1>, vector<32x128xf32>
    %138 = arith.truncf %137 : vector<32x128xf32> to vector<32x128xbf16>
    %c0_30 = arith.constant 0 : index
    %c0_31 = arith.constant 0 : index
    %139 = vector.load %arg8[%c0_30, %c0_31] : memref<128x512xbf16, #tpu.memory_space<vmem>>, vector<128x512xbf16>
    %cst_32 = arith.constant dense<0.000000e+00> : vector<32x512xf32>
    %140 = tpu.matmul %138, %139, %cst_32 {dimension_numbers = #tpu.dot_dimension_numbers<[1], [0], [0], [1], [0, 0, 1, 1], [], []>} : vector<32x128xbf16>, vector<128x512xbf16>, vector<32x512xf32> -> vector<32x512xf32>
    %141 = vector.extract_strided_slice %140 {offsets = [0, 0], sizes = [32, 128], strides = [1, 1]} : vector<32x512xf32> to vector<32x128xf32>
    %142 = vector.extract_strided_slice %140 {offsets = [0, 128], sizes = [32, 128], strides = [1, 1]} : vector<32x512xf32> to vector<32x128xf32>
    %143 = vector.extract_strided_slice %140 {offsets = [0, 256], sizes = [32, 128], strides = [1, 1]} : vector<32x512xf32> to vector<32x128xf32>
    %144 = vector.extract_strided_slice %140 {offsets = [0, 384], sizes = [32, 128], strides = [1, 1]} : vector<32x512xf32> to vector<32x128xf32>
    %145 = arith.truncf %141 : vector<32x128xf32> to vector<32x128xbf16>
    %146 = tpu.transpose %144, [1, 0] : vector<32x128xf32> -> vector<128x32xf32>
    %147 = vector.extract_strided_slice %143 {offsets = [0, 0], sizes = [32, 1], strides = [1, 1]} : vector<32x128xf32> to vector<32x1xf32>
    %148 = vector.extract_strided_slice %146 {offsets = [0, 0], sizes = [1, 32], strides = [1, 1]} : vector<128x32xf32> to vector<1x32xf32>
    %149 = vector.broadcast %147 : vector<32x1xf32> to vector<32x32xf32>
    %150 = vector.broadcast %148 : vector<1x32xf32> to vector<32x32xf32>
    %151 = arith.addf %149, %150 : vector<32x32xf32>
    %152 = vector.extract_strided_slice %143 {offsets = [0, 1], sizes = [32, 1], strides = [1, 1]} : vector<32x128xf32> to vector<32x1xf32>
    %153 = vector.extract_strided_slice %146 {offsets = [1, 0], sizes = [1, 32], strides = [1, 1]} : vector<128x32xf32> to vector<1x32xf32>
    %154 = vector.broadcast %152 : vector<32x1xf32> to vector<32x32xf32>
    %155 = vector.broadcast %153 : vector<1x32xf32> to vector<32x32xf32>
    %156 = arith.addf %154, %155 : vector<32x32xf32>
    %157 = vector.extract_strided_slice %143 {offsets = [0, 2], sizes = [32, 1], strides = [1, 1]} : vector<32x128xf32> to vector<32x1xf32>
    %158 = vector.extract_strided_slice %146 {offsets = [2, 0], sizes = [1, 32], strides = [1, 1]} : vector<128x32xf32> to vector<1x32xf32>
    %159 = vector.broadcast %157 : vector<32x1xf32> to vector<32x32xf32>
    %160 = vector.broadcast %158 : vector<1x32xf32> to vector<32x32xf32>
    %161 = arith.addf %159, %160 : vector<32x32xf32>
    %162 = vector.extract_strided_slice %143 {offsets = [0, 3], sizes = [32, 1], strides = [1, 1]} : vector<32x128xf32> to vector<32x1xf32>
    %163 = vector.extract_strided_slice %146 {offsets = [3, 0], sizes = [1, 32], strides = [1, 1]} : vector<128x32xf32> to vector<1x32xf32>
    %164 = vector.broadcast %162 : vector<32x1xf32> to vector<32x32xf32>
    %165 = vector.broadcast %163 : vector<1x32xf32> to vector<32x32xf32>
    %166 = arith.addf %164, %165 : vector<32x32xf32>
    %167 = vector.extract_strided_slice %143 {offsets = [0, 4], sizes = [32, 1], strides = [1, 1]} : vector<32x128xf32> to vector<32x1xf32>
    %168 = vector.extract_strided_slice %146 {offsets = [4, 0], sizes = [1, 32], strides = [1, 1]} : vector<128x32xf32> to vector<1x32xf32>
    %169 = vector.broadcast %167 : vector<32x1xf32> to vector<32x32xf32>
    %170 = vector.broadcast %168 : vector<1x32xf32> to vector<32x32xf32>
    %171 = arith.addf %169, %170 : vector<32x32xf32>
    %172 = vector.extract_strided_slice %143 {offsets = [0, 5], sizes = [32, 1], strides = [1, 1]} : vector<32x128xf32> to vector<32x1xf32>
    %173 = vector.extract_strided_slice %146 {offsets = [5, 0], sizes = [1, 32], strides = [1, 1]} : vector<128x32xf32> to vector<1x32xf32>
    %174 = vector.broadcast %172 : vector<32x1xf32> to vector<32x32xf32>
    %175 = vector.broadcast %173 : vector<1x32xf32> to vector<32x32xf32>
    %176 = arith.addf %174, %175 : vector<32x32xf32>
    %177 = tpu.concatenate %151, %156, %161, %166, %171, %176 in 0 : vector<32x32xf32>, vector<32x32xf32>, vector<32x32xf32>, vector<32x32xf32>, vector<32x32xf32>, vector<32x32xf32> -> vector<192x32xf32>
    %cst_33 = arith.constant 0.000000e+00 : f32
    %178 = vector.broadcast %cst_33 : f32 to vector<192x32xf32>
    %179 = arith.cmpf ogt, %177, %178 : vector<192x32xf32>
    %cst_34 = arith.constant 2.000000e-01 : f32
    %180 = vector.broadcast %cst_34 : f32 to vector<192x32xf32>
    %181 = arith.mulf %180, %177 : vector<192x32xf32>
    %182 = arith.select %179, %177, %181 : vector<192x32xi1>, vector<192x32xf32>
    %183 = arith.addf %182, %2 : vector<192x32xf32>
    %cst_35 = arith.constant dense<0xFF800000> : vector<192xf32>
    %184 = vector.multi_reduction <maximumf>, %183, %cst_35 [1] : vector<192x32xf32> to vector<192xf32>
    %185 = vector.shape_cast %184 : vector<192xf32> to vector<192x1xf32>
    %186 = vector.broadcast %185 : vector<192x1xf32> to vector<192x32xf32>
    %187 = arith.subf %183, %186 : vector<192x32xf32>
    %188 = math.exp %187 : vector<192x32xf32>
    %cst_36 = arith.constant dense<0.000000e+00> : vector<192xf32>
    %189 = vector.multi_reduction <add>, %188, %cst_36 [1] : vector<192x32xf32> to vector<192xf32>
    %190 = vector.shape_cast %189 : vector<192xf32> to vector<192x1xf32>
    %191 = tpu.reciprocal %190 {approx = true} : vector<192x1xf32> -> vector<192x1xf32>
    %192 = vector.broadcast %191 : vector<192x1xf32> to vector<192x32xf32>
    %193 = arith.mulf %188, %192 : vector<192x32xf32>
    %194 = arith.truncf %193 : vector<192x32xf32> to vector<192x32xbf16>
    %cst_37 = arith.constant dense<0.000000e+00> : vector<192x128xf32>
    %195 = tpu.matmul %194, %145, %cst_37 {dimension_numbers = #tpu.dot_dimension_numbers<[1], [0], [0], [1], [0, 0, 1, 1], [], []>} : vector<192x32xbf16>, vector<32x128xbf16>, vector<192x128xf32> -> vector<192x128xf32>
    %c0_38 = arith.constant 0 : index
    %c0_39 = arith.constant 0 : index
    %196 = vector.load %arg10[%c0_38, %c0_39] : memref<192x128xf32, #tpu.memory_space<vmem>>, vector<192x128xf32>
    %197 = arith.mulf %195, %196 : vector<192x128xf32>
    %198 = vector.extract_strided_slice %197 {offsets = [0, 0], sizes = [32, 128], strides = [1, 1]} : vector<192x128xf32> to vector<32x128xf32>
    %199 = vector.extract_strided_slice %197 {offsets = [32, 0], sizes = [32, 128], strides = [1, 1]} : vector<192x128xf32> to vector<32x128xf32>
    %200 = arith.addf %198, %199 : vector<32x128xf32>
    %201 = vector.extract_strided_slice %197 {offsets = [64, 0], sizes = [32, 128], strides = [1, 1]} : vector<192x128xf32> to vector<32x128xf32>
    %202 = arith.addf %200, %201 : vector<32x128xf32>
    %203 = vector.extract_strided_slice %197 {offsets = [96, 0], sizes = [32, 128], strides = [1, 1]} : vector<192x128xf32> to vector<32x128xf32>
    %204 = arith.addf %202, %203 : vector<32x128xf32>
    %205 = vector.extract_strided_slice %197 {offsets = [128, 0], sizes = [32, 128], strides = [1, 1]} : vector<192x128xf32> to vector<32x128xf32>
    %206 = arith.addf %204, %205 : vector<32x128xf32>
    %207 = vector.extract_strided_slice %197 {offsets = [160, 0], sizes = [32, 128], strides = [1, 1]} : vector<192x128xf32> to vector<32x128xf32>
    %208 = arith.addf %206, %207 : vector<32x128xf32>
    %209 = arith.truncf %208 : vector<32x128xf32> to vector<32x128xbf16>
    %c0_40 = arith.constant 0 : index
    %c0_41 = arith.constant 0 : index
    %210 = vector.load %arg11[%c0_40, %c0_41] : memref<128x128xbf16, #tpu.memory_space<vmem>>, vector<128x128xbf16>
    %cst_42 = arith.constant dense<0.000000e+00> : vector<32x128xf32>
    %211 = tpu.matmul %209, %210, %cst_42 {dimension_numbers = #tpu.dot_dimension_numbers<[1], [0], [0], [1], [0, 0, 1, 1], [], []>} : vector<32x128xbf16>, vector<128x128xbf16>, vector<32x128xf32> -> vector<32x128xf32>
    %cst_43 = arith.constant 0.166666672 : f32
    %212 = vector.broadcast %cst_43 : f32 to vector<32x128xf32>
    %213 = arith.mulf %211, %212 : vector<32x128xf32>
    %214 = arith.addf %213, %142 : vector<32x128xf32>
    %c0_44 = arith.constant 0 : index
    %c0_45 = arith.constant 0 : index
    %215 = vector.load %arg9[%c0_44, %c0_45] : memref<1x128xf32, #tpu.memory_space<vmem>>, vector<1x128xf32>
    %216 = vector.broadcast %215 : vector<1x128xf32> to vector<32x128xf32>
    %217 = arith.addf %214, %216 : vector<32x128xf32>
    %c0_46 = arith.constant 0 : index
    %c0_47 = arith.constant 0 : index
    %218 = vector.load %arg12[%c0_46, %c0_47] : memref<32x128xf32, #tpu.memory_space<vmem>>, vector<32x128xf32>
    tpu.vector_store %arg12[%c0_46, %c0_47], %217 {strides = array<i32>} : memref<32x128xf32, #tpu.memory_space<vmem>>, vector<32x128xf32>,
    return
  }
}

</mosaic_0001>

<llo_original>
// kernel: net_forward.1
$region0: #{net_forward.1}
  #allocation0 [shape = 'u32[]', space=smem, size = 0x4, offset = 0x4, fixed_abs, tag = 'smem constant byte address 0x4 - core index']
  #allocation1 [shape = 'u32[72,128]{1,0:T(1,128)}', space=vmem, size = 0x9000, scoped, tag = 'internal scratch']
  %s0 = inlined_call_operand.hbm [shape: f32[32,32], index: 0, kind: input, shape index: {}]
  %s1 = inlined_call_operand.hbm [shape: f32[32,32], index: 1, kind: input, shape index: {}]
  %s2 = inlined_call_operand.hbm [shape: bf16[32,512], index: 2, kind: input, shape index: {}]
  %s3 = inlined_call_operand.hbm [shape: f32[1,128], index: 3, kind: input, shape index: {}]
  %s4 = inlined_call_operand.hbm [shape: f32[128,128], index: 4, kind: input, shape index: {}, may-alias: {4,7}]
  %s5 = inlined_call_operand.hbm [shape: bf16[128,512], index: 5, kind: input, shape index: {}]
  %s6 = inlined_call_operand.vmem [shape: f32[1,128], index: 6, kind: input, shape index: {}]
  %s7 = inlined_call_operand.hbm [shape: f32[128,128], index: 7, kind: input, shape index: {}, may-alias: {4,7}]
  %s8 = inlined_call_operand.hbm [shape: bf16[128,512], index: 8, kind: input, shape index: {}]
  %s9 = inlined_call_operand.vmem [shape: f32[1,128], index: 9, kind: input, shape index: {}]
  %s10 = inlined_call_operand.hbm [shape: f32[192,128], index: 10, kind: input, shape index: {}]
  %s11 = inlined_call_operand.hbm [shape: bf16[128,128], index: 11, kind: input, shape index: {}]
  %s12 = inlined_call_operand.vmem [shape: f32[32,128], index: 12, kind: output, shape index: {}]
  %s13 = sld [smem:[#allocation0]]
  $region98: #{net_forward.1} parent=0
    _
  %s15 = ssub.s32 1, %s13
  %s16 = scalar_select 0, %s15, %s13
  $region1: #{net_forward.1} parent=0
    #allocation2 [shape = 'u8[16384]{0}', space=vmem, size = 0x4000, scoped, tag = 'input window, operand 0, single buffered']
    #allocation3 [shape = 's32[1]{0}', space=sflag, size = 0x4, scoped, tag = 'scoped memory for net_forward.1']
    #allocation4 [shape = 'u8[16384]{0}', space=vmem, size = 0x4000, scoped, tag = 'input window, operand 1, single buffered']
    #allocation5 [shape = 's32[1]{0}', space=sflag, size = 0x4, scoped, tag = 'scoped memory for net_forward.1']
    #allocation6 [shape = 'u8[32768]{0}', space=vmem, size = 0x8000, scoped, tag = 'input window, operand 2, single buffered']
    #allocation7 [shape = 'u8[512]{0}', space=vmem, size = 0x400, scoped, tag = 'input window, operand 3, single buffered']
    #allocation8 [shape = 's32[1]{0}', space=sflag, size = 0x4, scoped, tag = 'scoped memory for net_forward.1']
    #allocation9 [shape = 'u8[65536]{0}', space=vmem, size = 0x10000, scoped, tag = 'input window, operand 4, single buffered']
    #allocation10 [shape = 'u8[131072]{0}', space=vmem, size = 0x20000, scoped, tag = 'input window, operand 5, single buffered']
    #allocation11 [shape = 's32[1]{0}', space=sflag, size = 0x4, scoped, tag = 'scoped memory for net_forward.1']
    #allocation12 [shape = 'u8[65536]{0}', space=vmem, size = 0x10000, scoped, tag = 'input window, operand 7, single buffered']
    #allocation13 [shape = 'u8[131072]{0}', space=vmem, size = 0x20000, scoped, tag = 'input window, operand 8, single buffered']
    #allocation14 [shape = 's32[1]{0}', space=sflag, size = 0x4, scoped, tag = 'scoped memory for net_forward.1']
    #allocation15 [shape = 'u8[98304]{0}', space=vmem, size = 0x18000, scoped, tag = 'input window, operand 10, single buffered']
    #allocation16 [shape = 'u8[32768]{0}', space=vmem, size = 0x8000, scoped, tag = 'input window, operand 11, single buffered']
    #allocation17 [shape = 's32[1]{0}', space=sflag, size = 0x4, scoped, tag = 'scoped memory for net_forward.1']
    %17 = vsyncpa [#allocation3], 0
    %18 = vsyncpa [#allocation5], 0
    %19 = vsyncpa [#allocation8], 0
    %20 = vsyncpa [#allocation11], 0
    %21 = vsyncpa [#allocation14], 0
    %22 = vsyncpa [#allocation17], 0
    // Predicated region
    $region2: #{net_forward.1} parent=1 // pred_check
      _
    $region3: #{net_forward.1} parent=1 // pred_check_branch
      %24 = sbr.rel (0) target = $region5
    $region4: #{net_forward.1} parent=1 // pred_region
      %26 = vsyncadd [#allocation3], 0
      %s27 = sshll.u32 %s0, 4
      %s28 = int_to_ptr.hbm [resolvable:$true] %s27
      %s29 = sshll.u32 [#allocation2], 4
      %s30 = int_to_ptr.vmem [resolvable:$true] %s29
      %35 = dma.hbm_to_vmem [thread:$0]  %s28, 512, %s30, [#allocation3], 128, 128, 8
    $region5: #{net_forward.1} parent=1 // pred_fallthru
      _
    // Predicated region
    $region6: #{net_forward.1} parent=1 // pred_check
      _
    $region7: #{net_forward.1} parent=1 // pred_check_branch
      %37 = sbr.rel (0) target = $region9
    $region8: #{net_forward.1} parent=1 // pred_region
      %39 = vsyncadd [#allocation5], 0
      %s40 = sshll.u32 %s1, 4
      %s41 = int_to_ptr.hbm [resolvable:$true] %s40
      %s42 = sshll.u32 [#allocation4], 4
      %s43 = int_to_ptr.vmem [resolvable:$true] %s42
      %48 = dma.hbm_to_vmem [thread:$0]  %s41, 512, %s43, [#allocation5], 128, 128, 8
    $region9: #{net_forward.1} parent=1 // pred_fallthru
      _
    // Predicated region
    $region10: #{net_forward.1} parent=1 // pred_check
      _
    $region11: #{net_forward.1} parent=1 // pred_check_branch
      %50 = sbr.rel (0) target = $region13
    $region12: #{net_forward.1} parent=1 // pred_region
      %52 = vsyncadd [#allocation5], 0
      %s53 = sshll.u32 %s2, 4
      %s54 = int_to_ptr.hbm [resolvable:$true] %s53
      %s55 = sshll.u32 [#allocation6], 4
      %s56 = int_to_ptr.vmem [resolvable:$true] %s55
      %61 = dma.hbm_to_vmem [thread:$0]  %s54, 1024, %s56, [#allocation5], 256, 256, 16
    $region13: #{net_forward.1} parent=1 // pred_fallthru
      _
    // Predicated region
    $region14: #{net_forward.1} parent=1 // pred_check
      _
    $region15: #{net_forward.1} parent=1 // pred_check_branch
      %63 = sbr.rel (0) target = $region17
    $region16: #{net_forward.1} parent=1 // pred_region
      %65 = vsyncadd [#allocation8], 0
      %s67 = sshll.u32 %s3, 4
      %s68 = int_to_ptr.hbm [resolvable:$true] %s67
      %s69 = sshll.u32 [#allocation7], 4
      %s70 = int_to_ptr.vmem [resolvable:$true] %s69
      %72 = dma.hbm_to_vmem [thread:$0]  %s68, 16, %s70, [#allocation8]
    $region17: #{net_forward.1} parent=1 // pred_fallthru
      _
    // Predicated region
    $region18: #{net_forward.1} parent=1 // pred_check
      _
    $region19: #{net_forward.1} parent=1 // pred_check_branch
      %74 = sbr.rel (0) target = $region21
    $region20: #{net_forward.1} parent=1 // pred_region
      %76 = vsyncadd [#allocation8], 0
      %s77 = sshll.u32 %s4, 4
      %s78 = int_to_ptr.hbm [resolvable:$true] %s77
      %s79 = sshll.u32 [#allocation9], 4
      %s80 = int_to_ptr.vmem [resolvable:$true] %s79
      %85 = dma.hbm_to_vmem [thread:$0]  %s78, 2048, %s80, [#allocation8], 128, 128, 8
    $region21: #{net_forward.1} parent=1 // pred_fallthru
      _
    // Predicated region
    $region22: #{net_forward.1} parent=1 // pred_check
      _
    $region23: #{net_forward.1} parent=1 // pred_check_branch
      %87 = sbr.rel (0) target = $region25
    $region24: #{net_forward.1} parent=1 // pred_region
      %89 = vsyncadd [#allocation11], 0
      %s90 = sshll.u32 %s5, 4
      %s91 = int_to_ptr.hbm [resolvable:$true] %s90
      %s92 = sshll.u32 [#allocation10], 4
      %s93 = int_to_ptr.vmem [resolvable:$true] %s92
      %98 = dma.hbm_to_vmem [thread:$0]  %s91, 4096, %s93, [#allocation11], 256, 256, 16
    $region25: #{net_forward.1} parent=1 // pred_fallthru
      _
    // Predicated region
    $region26: #{net_forward.1} parent=1 // pred_check
      _
    $region27: #{net_forward.1} parent=1 // pred_check_branch
      %100 = sbr.rel (0) target = $region29
    $region28: #{net_forward.1} parent=1 // pred_region
      _
    $region29: #{net_forward.1} parent=1 // pred_fallthru
      _
    // Predicated region
    $region30: #{net_forward.1} parent=1 // pred_check
      _
    $region31: #{net_forward.1} parent=1 // pred_check_branch
      %102 = sbr.rel (0) target = $region33
    $region32: #{net_forward.1} parent=1 // pred_region
      %104 = vsyncadd [#allocation11], 0
      %s105 = sshll.u32 %s7, 4
      %s106 = int_to_ptr.hbm [resolvable:$true] %s105
      %s107 = sshll.u32 [#allocation12], 4
      %s108 = int_to_ptr.vmem [resolvable:$true] %s107
      %113 = dma.hbm_to_vmem [thread:$0]  %s106, 2048, %s108, [#allocation11], 128, 128, 8
    $region33: #{net_forward.1} parent=1 // pred_fallthru
      _
    // Predicated region
    $region34: #{net_forward.1} parent=1 // pred_check
      _
    $region35: #{net_forward.1} parent=1 // pred_check_branch
      %115 = sbr.rel (0) target = $region37
    $region36: #{net_forward.1} parent=1 // pred_region
      %117 = vsyncadd [#allocation14], 0
      %s118 = sshll.u32 %s8, 4
      %s119 = int_to_ptr.hbm [resolvable:$true] %s118
      %s120 = sshll.u32 [#allocation13], 4
      %s121 = int_to_ptr.vmem [resolvable:$true] %s120
      %126 = dma.hbm_to_vmem [thread:$0]  %s119, 4096, %s121, [#allocation14], 256, 256, 16
    $region37: #{net_forward.1} parent=1 // pred_fallthru
      _
    // Predicated region
    $region38: #{net_forward.1} parent=1 // pred_check
      _
    $region39: #{net_forward.1} parent=1 // pred_check_branch
      %128 = sbr.rel (0) target = $region41
    $region40: #{net_forward.1} parent=1 // pred_region
      _
    $region41: #{net_forward.1} parent=1 // pred_fallthru
      _
    // Predicated region
    $region42: #{net_forward.1} parent=1 // pred_check
      _
    $region43: #{net_forward.1} parent=1 // pred_check_branch
      %130 = sbr.rel (0) target = $region45
    $region44: #{net_forward.1} parent=1 // pred_region
      %132 = vsyncadd [#allocation14], 0
      %s133 = sshll.u32 %s10, 4
      %s134 = int_to_ptr.hbm [resolvable:$true] %s133
      %s135 = sshll.u32 [#allocation15], 4
      %s136 = int_to_ptr.vmem [resolvable:$true] %s135
      %141 = dma.hbm_to_vmem [thread:$0]  %s134, 3072, %s136, [#allocation14], 128, 128, 8
    $region45: #{net_forward.1} parent=1 // pred_fallthru
      _
    // Predicated region
    $region46: #{net_forward.1} parent=1 // pred_check
      _
    $region47: #{net_forward.1} parent=1 // pred_check_branch
      %143 = sbr.rel (0) target = $region49
    $region48: #{net_forward.1} parent=1 // pred_region
      %145 = vsyncadd [#allocation17], 0
      %s146 = sshll.u32 %s11, 4
      %s147 = int_to_ptr.hbm [resolvable:$true] %s146
      %s148 = sshll.u32 [#allocation16], 4
      %s149 = int_to_ptr.vmem [resolvable:$true] %s148
      %154 = dma.hbm_to_vmem [thread:$0]  %s147, 1024, %s149, [#allocation17], 64, 64, 4
    $region49: #{net_forward.1} parent=1 // pred_fallthru
      _
    // Predicated region
    $region50: #{net_forward.1} parent=1 // pred_check
      _
    $region51: #{net_forward.1} parent=1 // pred_check_branch
      %156 = sbr.rel (0) target = $region53
    $region52: #{net_forward.1} parent=1 // pred_region
      %158 = dma.done [#allocation3], 512
    $region53: #{net_forward.1} parent=1 // pred_fallthru
      _
    // Predicated region
    $region54: #{net_forward.1} parent=1 // pred_check
      _
    $region55: #{net_forward.1} parent=1 // pred_check_branch
      %160 = sbr.rel (0) target = $region57
    $region56: #{net_forward.1} parent=1 // pred_region
      %162 = dma.done [#allocation5], 512
    $region57: #{net_forward.1} parent=1 // pred_fallthru
      _
    // Predicated region
    $region58: #{net_forward.1} parent=1 // pred_check
      _
    $region59: #{net_forward.1} parent=1 // pred_check_branch
      %164 = sbr.rel (0) target = $region61
    $region60: #{net_forward.1} parent=1 // pred_region
      %166 = dma.done [#allocation5], 1024
    $region61: #{net_forward.1} parent=1 // pred_fallthru
      _
    // Predicated region
    $region62: #{net_forward.1} parent=1 // pred_check
      _
    $region63: #{net_forward.1} parent=1 // pred_check_branch
      %168 = sbr.rel (0) target = $region65
    $region64: #{net_forward.1} parent=1 // pred_region
      %170 = dma.done [#allocation8], 16
    $region65: #{net_forward.1} parent=1 // pred_fallthru
      _
    // Predicated region
    $region66: #{net_forward.1} parent=1 // pred_check
      _
    $region67: #{net_forward.1} parent=1 // pred_check_branch
      %172 = sbr.rel (0) target = $region69
    $region68: #{net_forward.1} parent=1 // pred_region
      %174 = dma.done [#allocation8], 2048
    $region69: #{net_forward.1} parent=1 // pred_fallthru
      _
    // Predicated region
    $region70: #{net_forward.1} parent=1 // pred_check
      _
    $region71: #{net_forward.1} parent=1 // pred_check_branch
      %176 = sbr.rel (0) target = $region73
    $region72: #{net_forward.1} parent=1 // pred_region
      %178 = dma.done [#allocation11], 4096
    $region73: #{net_forward.1} parent=1 // pred_fallthru
      _
    // Predicated region
    $region74: #{net_forward.1} parent=1 // pred_check
      _
    $region75: #{net_forward.1} parent=1 // pred_check_branch
      %180 = sbr.rel (0) target = $region77
    $region76: #{net_forward.1} parent=1 // pred_region
      %182 = dma.done [#allocation11], 2048
    $region77: #{net_forward.1} parent=1 // pred_fallthru
      _
    // Predicated region
    $region78: #{net_forward.1} parent=1 // pred_check
      _
    $region79: #{net_forward.1} parent=1 // pred_check_branch
      %184 = sbr.rel (0) target = $region81
    $region80: #{net_forward.1} parent=1 // pred_region
      %186 = dma.done [#allocation14], 4096
    $region81: #{net_forward.1} parent=1 // pred_fallthru
      _
    // Predicated region
    $region82: #{net_forward.1} parent=1 // pred_check
      _
    $region83: #{net_forward.1} parent=1 // pred_check_branch
      %188 = sbr.rel (0) target = $region85
    $region84: #{net_forward.1} parent=1 // pred_region
      %190 = dma.done [#allocation14], 3072
    $region85: #{net_forward.1} parent=1 // pred_fallthru
      _
    // Predicated region
    $region86: #{net_forward.1} parent=1 // pred_check
      _
    $region87: #{net_forward.1} parent=1 // pred_check_branch
      %192 = sbr.rel (0) target = $region89
    $region88: #{net_forward.1} parent=1 // pred_region
      %194 = dma.done [#allocation17], 1024
    $region89: #{net_forward.1} parent=1 // pred_fallthru
      _
    %v196 = vld [vmem:[#allocation4] sm:$0xff]
    %v197 = vld [vmem:[#allocation4 + $0x8] sm:$0xff]
    %v198 = vld [vmem:[#allocation4 + $0x10] sm:$0xff]
    %v199 = vld [vmem:[#allocation4 + $0x18] sm:$0xff]
    %v200 = vld [vmem:[#allocation2] sm:$0xff]
    %v201 = vld [vmem:[#allocation2 + $0x8] sm:$0xff]
    %v202 = vld [vmem:[#allocation2 + $0x10] sm:$0xff]
    %v203 = vld [vmem:[#allocation2 + $0x18] sm:$0xff]
    %v204 = vpack.c.bf16 %v201, %v200
    %v205 = vpack.c.bf16 %v203, %v202
    %v206 = vld [vmem:[#allocation6] sm:$0xff]
    %v207 = vld [vmem:[#allocation6 + $0x8] sm:$0xff]
    %v208 = vld [vmem:[#allocation6 + $0x10] sm:$0xff]
    %v209 = vld [vmem:[#allocation6 + $0x18] sm:$0xff]
    %v210 = vld [vmem:[#allocation6 + $0x20] sm:$0xff]
    %v211 = vld [vmem:[#allocation6 + $0x28] sm:$0xff]
    %v212 = vld [vmem:[#allocation6 + $0x30] sm:$0xff]
    %v213 = vld [vmem:[#allocation6 + $0x38] sm:$0xff]
    %v222 = vunpack.c.l.b16 %v206
    %v223 = vunpack.c.h.b16 %v206
    %v224 = vunpack.c.l.b16 %v207
    %v225 = vunpack.c.h.b16 %v207
    %v226 = vunpack.c.l.b16 %v208
    %v227 = vunpack.c.h.b16 %v208
    %v228 = vunpack.c.l.b16 %v209
    %v229 = vunpack.c.h.b16 %v209
    %v230 = vunpack.c.l.b16 %v210
    %v231 = vunpack.c.h.b16 %v210
    %v232 = vunpack.c.l.b16 %v211
    %v233 = vunpack.c.h.b16 %v211
    %v234 = vunpack.c.l.b16 %v212
    %v235 = vunpack.c.h.b16 %v212
    %v236 = vunpack.c.l.b16 %v213
    %v237 = vunpack.c.h.b16 %v213
    %v238 = vpack.c.b16 %v226, %v222
    %v239 = vpack.c.b16 %v227, %v223
    %v240 = vpack.c.b16 %v228, %v224
    %v241 = vpack.c.b16 %v229, %v225
    %v242 = vpack.c.b16 %v234, %v230
    %v243 = vpack.c.b16 %v235, %v231
    %v244 = vpack.c.b16 %v236, %v232
    %v245 = vpack.c.b16 %v237, %v233
    %vm254 = vcmask 261120
    %v256 = vsel %vm254, %v204, 0
    %v259 = vsel %vm254, %v205, 0
    %261 = vmatpush.bf16.msra.mxu0 0
    %262 = vmatpush.bf16.msra.mxu0 0
    %263 = vmatpush.bf16.msra.mxu0 0
    %264 = vmatpush.bf16.msra.mxu0 0
    %265 = vmatpush.bf16.msra.mxu0 0
    %266 = vmatpush.bf16.msra.mxu0 0
    %267 = vmatpush.bf16.msra.mxu0 %v242
    %268 = vmatpush.bf16.msra.mxu0 %v238
    %269 = vmatmul.bf16.gmra.mxu0 %v256
    %v270 = vpop.f32.mrf.mxu0
    %v271 = vadd.f32 0.0, %v270
    %v272 = vpop.f32.mrf.mxu0
    %v273 = vadd.f32 0.0, %v272
    %274 = vmatmul.bf16.gmra.mxu0 %v259
    %v275 = vpop.f32.mrf.mxu0
    %v276 = vadd.f32 0.0, %v275
    %v277 = vpop.f32.mrf.mxu0
    %v278 = vadd.f32 0.0, %v277
    %279 = vdwg.mxu0
    %280 = vmatpush.bf16.msra.mxu0 0
    %281 = vmatpush.bf16.msra.mxu0 0
    %282 = vmatpush.bf16.msra.mxu0 0
    %283 = vmatpush.bf16.msra.mxu0 0
    %284 = vmatpush.bf16.msra.mxu0 0
    %285 = vmatpush.bf16.msra.mxu0 0
    %286 = vmatpush.bf16.msra.mxu0 %v243
    %287 = vmatpush.bf16.msra.mxu0 %v239
    %288 = vmatmul.bf16.gmra.mxu0 %v256
    %v289 = vpop.f32.mrf.mxu0
    %v290 = vadd.f32 0.0, %v289
    %v291 = vpop.f32.mrf.mxu0
    %v292 = vadd.f32 0.0, %v291
    %293 = vmatmul.bf16.gmra.mxu0 %v259
    %v294 = vpop.f32.mrf.mxu0
    %v295 = vadd.f32 0.0, %v294
    %v296 = vpop.f32.mrf.mxu0
    %v297 = vadd.f32 0.0, %v296
    %298 = vdwg.mxu0
    %299 = vmatpush.bf16.msra.mxu0 0
    %300 = vmatpush.bf16.msra.mxu0 0
    %301 = vmatpush.bf16.msra.mxu0 0
    %302 = vmatpush.bf16.msra.mxu0 0
    %303 = vmatpush.bf16.msra.mxu0 0
    %304 = vmatpush.bf16.msra.mxu0 0
    %305 = vmatpush.bf16.msra.mxu0 %v244
    %306 = vmatpush.bf16.msra.mxu0 %v240
    %307 = vmatmul.bf16.gmra.mxu0 %v256
    %v308 = vpop.f32.mrf.mxu0
    %v309 = vadd.f32 0.0, %v308
    %v310 = vpop.f32.mrf.mxu0
    %v311 = vadd.f32 0.0, %v310
    %312 = vmatmul.bf16.gmra.mxu0 %v259
    %v313 = vpop.f32.mrf.mxu0
    %v314 = vadd.f32 0.0, %v313
    %v315 = vpop.f32.mrf.mxu0
    %v316 = vadd.f32 0.0, %v315
    %317 = vdwg.mxu0
    %318 = vmatpush.bf16.msra.mxu0 0
    %319 = vmatpush.bf16.msra.mxu0 0
    %320 = vmatpush.bf16.msra.mxu0 0
    %321 = vmatpush.bf16.msra.mxu0 0
    %322 = vmatpush.bf16.msra.mxu0 0
    %323 = vmatpush.bf16.msra.mxu0 0
    %324 = vmatpush.bf16.msra.mxu0 %v245
    %325 = vmatpush.bf16.msra.mxu0 %v241
    %326 = vmatmul.bf16.gmra.mxu0 %v256
    %v327 = vpop.f32.mrf.mxu0
    %v328 = vadd.f32 0.0, %v327
    %v329 = vpop.f32.mrf.mxu0
    %v330 = vadd.f32 0.0, %v329
    %331 = vmatmul.bf16.gmra.mxu0 %v259
    %v332 = vpop.f32.mrf.mxu0
    %v333 = vadd.f32 0.0, %v332
    %v334 = vpop.f32.mrf.mxu0
    %v335 = vadd.f32 0.0, %v334
    %336 = vdwg.mxu0
    %v337 = vpack.c.bf16 %v273, %v271
    %v338 = vpack.c.bf16 %v278, %v276
    %339 = vxpose.xlu0.b32.start [1/16] %v328, 128
    %340 = vxpose.xlu0.b32.cont [2/16] %v330, 128
    %341 = vxpose.xlu0.b32.cont [3/16] %v333, 128
    %342 = vxpose.xlu0.b32.cont [4/16] %v335, 128
    %343 = vxpose.xlu0.b32.cont [5/16] 0.0, 128
    %344 = vxpose.xlu0.b32.cont [6/16] 0.0, 128
    %345 = vxpose.xlu0.b32.cont [7/16] 0.0, 128
    %346 = vxpose.xlu0.b32.cont [8/16] 0.0, 128
    %347 = vxpose.xlu0.b32.cont [9/16] 0.0, 128
    %348 = vxpose.xlu0.b32.cont [10/16] 0.0, 128
    %349 = vxpose.xlu0.b32.cont [11/16] 0.0, 128
    %350 = vxpose.xlu0.b32.cont [12/16] 0.0, 128
    %351 = vxpose.xlu0.b32.cont [13/16] 0.0, 128
    %352 = vxpose.xlu0.b32.cont [14/16] 0.0, 128
    %353 = vxpose.xlu0.b32.cont [15/16] 0.0, 128
    %354 = vxpose.xlu0.b32.end [16/16] 0.0, 128
    %v355 = vpop.trf.xlu0
    %v356 = vpop.trf.xlu0
    %v357 = vpop.trf.xlu0
    %v358 = vpop.trf.xlu0
    %v359 = vpop.trf.xlu0
    %v360 = vpop.trf.xlu0
    %v361 = vpop.trf.xlu0
    %v362 = vpop.trf.xlu0
    %v363 = vpop.trf.xlu0
    %v364 = vpop.trf.xlu0
    %v365 = vpop.trf.xlu0
    %v366 = vpop.trf.xlu0
    %v367 = vpop.trf.xlu0
    %v368 = vpop.trf.xlu0
    %v369 = vpop.trf.xlu0
    %v370 = vpop.trf.xlu0
    %372 = vset.pattern.permute.xlu0 0
    %373 = vperm.xlu0 %372, %v309
    %v374 = vpop.permute.xlu0 %373
    %377 = vset.pattern.permute.xlu0 0
    %378 = vperm.xlu0 %377, %v311
    %v379 = vpop.permute.xlu0 %378
    %382 = vset.pattern.permute.xlu0 0
    %383 = vperm.xlu0 %382, %v314
    %v384 = vpop.permute.xlu0 %383
    %387 = vset.pattern.permute.xlu0 0
    %388 = vperm.xlu0 %387, %v316
    %v389 = vpop.permute.xlu0 %388
    %v391 = vperm.slane %v355, 0
    %v392 = vadd.f32 %v374, %v391
    %v393 = vadd.f32 %v379, %v391
    %v394 = vadd.f32 %v384, %v391
    %v395 = vadd.f32 %v389, %v391
    %396 = vset.pattern.permute.xlu0 1
    %397 = vperm.xlu0 %396, %v309
    %v398 = vpop.permute.xlu0 %397
    %400 = vset.pattern.permute.xlu0 1
    %401 = vperm.xlu0 %400, %v311
    %v402 = vpop.permute.xlu0 %401
    %404 = vset.pattern.permute.xlu0 1
    %405 = vperm.xlu0 %404, %v314
    %v406 = vpop.permute.xlu0 %405
    %408 = vset.pattern.permute.xlu0 1
    %409 = vperm.xlu0 %408, %v316
    %v410 = vpop.permute.xlu0 %409
    %v412 = vperm.slane %v355, 1
    %v413 = vadd.f32 %v398, %v412
    %v414 = vadd.f32 %v402, %v412
    %v415 = vadd.f32 %v406, %v412
    %v416 = vadd.f32 %v410, %v412
    %417 = vset.pattern.permute.xlu0 2
    %418 = vperm.xlu0 %417, %v309
    %v419 = vpop.permute.xlu0 %418
    %421 = vset.pattern.permute.xlu0 2
    %422 = vperm.xlu0 %421, %v311
    %v423 = vpop.permute.xlu0 %422
    %425 = vset.pattern.permute.xlu0 2
    %426 = vperm.xlu0 %425, %v314
    %v427 = vpop.permute.xlu0 %426
    %429 = vset.pattern.permute.xlu0 2
    %430 = vperm.xlu0 %429, %v316
    %v431 = vpop.permute.xlu0 %430
    %v433 = vperm.slane %v355, 2
    %v434 = vadd.f32 %v419, %v433
    %v435 = vadd.f32 %v423, %v433
    %v436 = vadd.f32 %v427, %v433
    %v437 = vadd.f32 %v431, %v433
    %438 = vset.pattern.permute.xlu0 3
    %439 = vperm.xlu0 %438, %v309
    %v440 = vpop.permute.xlu0 %439
    %442 = vset.pattern.permute.xlu0 3
    %443 = vperm.xlu0 %442, %v311
    %v444 = vpop.permute.xlu0 %443
    %446 = vset.pattern.permute.xlu0 3
    %447 = vperm.xlu0 %446, %v314
    %v448 = vpop.permute.xlu0 %447
    %450 = vset.pattern.permute.xlu0 3
    %451 = vperm.xlu0 %450, %v316
    %v452 = vpop.permute.xlu0 %451
    %v454 = vperm.slane %v355, 3
    %v455 = vadd.f32 %v440, %v454
    %v456 = vadd.f32 %v444, %v454
    %v457 = vadd.f32 %v448, %v454
    %v458 = vadd.f32 %v452, %v454
    %vm459 = vcmp.gt.f32.partialorder %v392, 0.0
    %vm460 = vcmp.gt.f32.partialorder %v393, 0.0
    %vm461 = vcmp.gt.f32.partialorder %v394, 0.0
    %vm462 = vcmp.gt.f32.partialorder %v395, 0.0
    %vm463 = vcmp.gt.f32.partialorder %v413, 0.0
    %vm464 = vcmp.gt.f32.partialorder %v414, 0.0
    %vm465 = vcmp.gt.f32.partialorder %v415, 0.0
    %vm466 = vcmp.gt.f32.partialorder %v416, 0.0
    %vm467 = vcmp.gt.f32.partialorder %v434, 0.0
    %vm468 = vcmp.gt.f32.partialorder %v435, 0.0
    %vm469 = vcmp.gt.f32.partialorder %v436, 0.0
    %vm470 = vcmp.gt.f32.partialorder %v437, 0.0
    %vm471 = vcmp.gt.f32.partialorder %v455, 0.0
    %vm472 = vcmp.gt.f32.partialorder %v456, 0.0
    %vm473 = vcmp.gt.f32.partialorder %v457, 0.0
    %vm474 = vcmp.gt.f32.partialorder %v458, 0.0
    %v475 = vmul.f32 %v392, 0.2
    %v476 = vmul.f32 %v393, 0.2
    %v477 = vmul.f32 %v394, 0.2
    %v478 = vmul.f32 %v395, 0.2
    %v479 = vmul.f32 %v413, 0.2
    %v480 = vmul.f32 %v414, 0.2
    %v481 = vmul.f32 %v415, 0.2
    %v482 = vmul.f32 %v416, 0.2
    %v483 = vmul.f32 %v434, 0.2
    %v484 = vmul.f32 %v435, 0.2
    %v485 = vmul.f32 %v436, 0.2
    %v486 = vmul.f32 %v437, 0.2
    %v487 = vmul.f32 %v455, 0.2
    %v488 = vmul.f32 %v456, 0.2
    %v489 = vmul.f32 %v457, 0.2
    %v490 = vmul.f32 %v458, 0.2
    %v491 = vsel %vm459, %v392, %v475
    %v492 = vsel %vm460, %v393, %v476
    %v493 = vsel %vm461, %v394, %v477
    %v494 = vsel %vm462, %v395, %v478
    %v495 = vsel %vm463, %v413, %v479
    %v496 = vsel %vm464, %v414, %v480
    %v497 = vsel %vm465, %v415, %v481
    %v498 = vsel %vm466, %v416, %v482
    %v499 = vsel %vm467, %v434, %v483
    %v500 = vsel %vm468, %v435, %v484
    %v501 = vsel %vm469, %v436, %v485
    %v502 = vsel %vm470, %v437, %v486
    %v503 = vsel %vm471, %v455, %v487
    %v504 = vsel %vm472, %v456, %v488
    %v505 = vsel %vm473, %v457, %v489
    %v506 = vsel %vm474, %v458, %v490
    %v507 = vadd.f32 %v491, %v196
    %v508 = vadd.f32 %v492, %v197
    %v509 = vadd.f32 %v493, %v198
    %v510 = vadd.f32 %v494, %v199
    %v511 = vadd.f32 %v495, %v196
    %v512 = vadd.f32 %v496, %v197
    %v513 = vadd.f32 %v497, %v198
    %v514 = vadd.f32 %v498, %v199
    %v515 = vadd.f32 %v499, %v196
    %v516 = vadd.f32 %v500, %v197
    %v517 = vadd.f32 %v501, %v198
    %v518 = vadd.f32 %v502, %v199
    %v519 = vadd.f32 %v503, %v196
    %v520 = vadd.f32 %v504, %v197
    %v521 = vadd.f32 %v505, %v198
    %v522 = vadd.f32 %v506, %v199
    %v523 = vsel %vm254, %v507, -inf
    %524 = vmax.xlane.f32.xlu0 %v523
    %v525 = vpop.xlane.xlu0 %524
    %v526 = vsel %vm254, %v508, -inf
    %527 = vmax.xlane.f32.xlu0 %v526
    %v528 = vpop.xlane.xlu0 %527
    %v529 = vsel %vm254, %v509, -inf
    %530 = vmax.xlane.f32.xlu0 %v529
    %v531 = vpop.xlane.xlu0 %530
    %v532 = vsel %vm254, %v510, -inf
    %533 = vmax.xlane.f32.xlu0 %v532
    %v534 = vpop.xlane.xlu0 %533
    %v535 = vsel %vm254, %v511, -inf
    %536 = vmax.xlane.f32.xlu0 %v535
    %v537 = vpop.xlane.xlu0 %536
    %v538 = vsel %vm254, %v512, -inf
    %539 = vmax.xlane.f32.xlu0 %v538
    %v540 = vpop.xlane.xlu0 %539
    %v541 = vsel %vm254, %v513, -inf
    %542 = vmax.xlane.f32.xlu0 %v541
    %v543 = vpop.xlane.xlu0 %542
    %v544 = vsel %vm254, %v514, -inf
    %545 = vmax.xlane.f32.xlu0 %v544
    %v546 = vpop.xlane.xlu0 %545
    %v547 = vsel %vm254, %v515, -inf
    %548 = vmax.xlane.f32.xlu0 %v547
    %v549 = vpop.xlane.xlu0 %548
    %v550 = vsel %vm254, %v516, -inf
    %551 = vmax.xlane.f32.xlu0 %v550
    %v552 = vpop.xlane.xlu0 %551
    %v553 = vsel %vm254, %v517, -inf
    %554 = vmax.xlane.f32.xlu0 %v553
    %v555 = vpop.xlane.xlu0 %554
    %v556 = vsel %vm254, %v518, -inf
    %557 = vmax.xlane.f32.xlu0 %v556
    %v558 = vpop.xlane.xlu0 %557
    %v559 = vsel %vm254, %v519, -inf
    %560 = vmax.xlane.f32.xlu0 %v559
    %v561 = vpop.xlane.xlu0 %560
    %v562 = vsel %vm254, %v520, -inf
    %563 = vmax.xlane.f32.xlu0 %v562
    %v564 = vpop.xlane.xlu0 %563
    %v565 = vsel %vm254, %v521, -inf
    %566 = vmax.xlane.f32.xlu0 %v565
    %v567 = vpop.xlane.xlu0 %566
    %v568 = vsel %vm254, %v522, -inf
    %569 = vmax.xlane.f32.xlu0 %v568
    %v570 = vpop.xlane.xlu0 %569
    %v571 = vsub.f32 %v507, %v525
    %v572 = vsub.f32 %v508, %v528
    %v573 = vsub.f32 %v509, %v531
    %v574 = vsub.f32 %v510, %v534
    %v575 = vsub.f32 %v511, %v537
    %v576 = vsub.f32 %v512, %v540
    %v577 = vsub.f32 %v513, %v543
    %v578 = vsub.f32 %v514, %v546
    %v579 = vsub.f32 %v515, %v549
    %v580 = vsub.f32 %v516, %v552
    %v581 = vsub.f32 %v517, %v555
    %v582 = vsub.f32 %v518, %v558
    %v583 = vsub.f32 %v519, %v561
    %v584 = vsub.f32 %v520, %v564
    %v585 = vsub.f32 %v521, %v567
    %v586 = vsub.f32 %v522, %v570
    %v587 = vmul.f32 %v571, 1.442695
    %v588 = vpow.pop %v587
    %v589 = vmul.f32 %v572, 1.442695
    %v590 = vpow.pop %v589
    %v591 = vmul.f32 %v573, 1.442695
    %v592 = vpow.pop %v591
    %v593 = vmul.f32 %v574, 1.442695
    %v594 = vpow.pop %v593
    %v595 = vmul.f32 %v575, 1.442695
    %v596 = vpow.pop %v595
    %v597 = vmul.f32 %v576, 1.442695
    %v598 = vpow.pop %v597
    %v599 = vmul.f32 %v577, 1.442695
    %v600 = vpow.pop %v599
    %v601 = vmul.f32 %v578, 1.442695
    %v602 = vpow.pop %v601
    %v603 = vmul.f32 %v579, 1.442695
    %v604 = vpow.pop %v603
    %v605 = vmul.f32 %v580, 1.442695
    %v606 = vpow.pop %v605
    %v607 = vmul.f32 %v581, 1.442695
    %v608 = vpow.pop %v607
    %v609 = vmul.f32 %v582, 1.442695
    %v610 = vpow.pop %v609
    %v611 = vmul.f32 %v583, 1.442695
    %v612 = vpow.pop %v611
    %v613 = vmul.f32 %v584, 1.442695
    %v614 = vpow.pop %v613
    %v615 = vmul.f32 %v585, 1.442695
    %v616 = vpow.pop %v615
    %v617 = vmul.f32 %v586, 1.442695
    %v618 = vpow.pop %v617
    %v619 = vsel %vm254, %v588, 0.0
    %620 = vadd.xlane.f32.xlu0 %v619
    %v621 = vpop.xlane.xlu0 %620
    %v622 = vsel %vm254, %v590, 0.0
    %623 = vadd.xlane.f32.xlu0 %v622
    %v624 = vpop.xlane.xlu0 %623
    %v625 = vsel %vm254, %v592, 0.0
    %626 = vadd.xlane.f32.xlu0 %v625
    %v627 = vpop.xlane.xlu0 %626
    %v628 = vsel %vm254, %v594, 0.0
    %629 = vadd.xlane.f32.xlu0 %v628
    %v630 = vpop.xlane.xlu0 %629
    %v631 = vsel %vm254, %v596, 0.0
    %632 = vadd.xlane.f32.xlu0 %v631
    %v633 = vpop.xlane.xlu0 %632
    %v634 = vsel %vm254, %v598, 0.0
    %635 = vadd.xlane.f32.xlu0 %v634
    %v636 = vpop.xlane.xlu0 %635
    %v637 = vsel %vm254, %v600, 0.0
    %638 = vadd.xlane.f32.xlu0 %v637
    %v639 = vpop.xlane.xlu0 %638
    %v640 = vsel %vm254, %v602, 0.0
    %641 = vadd.xlane.f32.xlu0 %v640
    %v642 = vpop.xlane.xlu0 %641
    %v643 = vsel %vm254, %v604, 0.0
    %644 = vadd.xlane.f32.xlu0 %v643
    %v645 = vpop.xlane.xlu0 %644
    %v646 = vsel %vm254, %v606, 0.0
    %647 = vadd.xlane.f32.xlu0 %v646
    %v648 = vpop.xlane.xlu0 %647
    %v649 = vsel %vm254, %v608, 0.0
    %650 = vadd.xlane.f32.xlu0 %v649
    %v651 = vpop.xlane.xlu0 %650
    %v652 = vsel %vm254, %v610, 0.0
    %653 = vadd.xlane.f32.xlu0 %v652
    %v654 = vpop.xlane.xlu0 %653
    %v655 = vsel %vm254, %v612, 0.0
    %656 = vadd.xlane.f32.xlu0 %v655
    %v657 = vpop.xlane.xlu0 %656
    %v658 = vsel %vm254, %v614, 0.0
    %659 = vadd.xlane.f32.xlu0 %v658
    %v660 = vpop.xlane.xlu0 %659
    %v661 = vsel %vm254, %v616, 0.0
    %662 = vadd.xlane.f32.xlu0 %v661
    %v663 = vpop.xlane.xlu0 %662
    %v664 = vsel %vm254, %v618, 0.0
    %665 = vadd.xlane.f32.xlu0 %v664
    %v666 = vpop.xlane.xlu0 %665
    %v667 = vrcp.pop %v621
    %v668 = vrcp.pop %v624
    %v669 = vrcp.pop %v627
    %v670 = vrcp.pop %v630
    %v671 = vrcp.pop %v633
    %v672 = vrcp.pop %v636
    %v673 = vrcp.pop %v639
    %v674 = vrcp.pop %v642
    %v675 = vrcp.pop %v645
    %v676 = vrcp.pop %v648
    %v677 = vrcp.pop %v651
    %v678 = vrcp.pop %v654
    %v679 = vrcp.pop %v657
    %v680 = vrcp.pop %v660
    %v681 = vrcp.pop %v663
    %v682 = vrcp.pop %v666
    %v683 = vmul.f32 %v588, %v667
    %v684 = vmul.f32 %v590, %v668
    %v685 = vmul.f32 %v592, %v669
    %v686 = vmul.f32 %v594, %v670
    %v687 = vmul.f32 %v596, %v671
    %v688 = vmul.f32 %v598, %v672
    %v689 = vmul.f32 %v600, %v673
    %v690 = vmul.f32 %v602, %v674
    %v691 = vmul.f32 %v604, %v675
    %v692 = vmul.f32 %v606, %v676
    %v693 = vmul.f32 %v608, %v677
    %v694 = vmul.f32 %v610, %v678
    %v695 = vmul.f32 %v612, %v679
    %v696 = vmul.f32 %v614, %v680
    %v697 = vmul.f32 %v616, %v681
    %v698 = vmul.f32 %v618, %v682
    %v699 = vpack.c.bf16 %v684, %v683
    %v700 = vpack.c.bf16 %v686, %v685
    %v701 = vpack.c.bf16 %v688, %v687
    %v702 = vpack.c.bf16 %v690, %v689
    %v703 = vpack.c.bf16 %v692, %v691
    %v704 = vpack.c.bf16 %v694, %v693
    %v705 = vpack.c.bf16 %v696, %v695
    %v706 = vpack.c.bf16 %v698, %v697
    %v708 = vsel %vm254, %v699, 0
    %v711 = vsel %vm254, %v700, 0
    %v714 = vsel %vm254, %v701, 0
    %v717 = vsel %vm254, %v702, 0
    %v720 = vsel %vm254, %v703, 0
    %v723 = vsel %vm254, %v704, 0
    %v726 = vsel %vm254, %v705, 0
    %v729 = vsel %vm254, %v706, 0
    %731 = vmatpush.bf16.msra.mxu0 0
    %732 = vmatpush.bf16.msra.mxu0 0
    %733 = vmatpush.bf16.msra.mxu0 0
    %734 = vmatpush.bf16.msra.mxu0 0
    %735 = vmatpush.bf16.msra.mxu0 0
    %736 = vmatpush.bf16.msra.mxu0 0
    %737 = vmatpush.bf16.msra.mxu0 %v338
    %738 = vmatpush.bf16.msra.mxu0 %v337
    %739 = vmatmul.bf16.gmra.mxu0 %v708
    %v740 = vpop.f32.mrf.mxu0
    %v741 = vadd.f32 0.0, %v740
    %v742 = vpop.f32.mrf.mxu0
    %v743 = vadd.f32 0.0, %v742
    %744 = vmatmul.bf16.gmra.mxu0 %v711
    %v745 = vpop.f32.mrf.mxu0
    %v746 = vadd.f32 0.0, %v745
    %v747 = vpop.f32.mrf.mxu0
    %v748 = vadd.f32 0.0, %v747
    %749 = vmatmul.bf16.gmra.mxu0 %v714
    %v750 = vpop.f32.mrf.mxu0
    %v751 = vadd.f32 0.0, %v750
    %v752 = vpop.f32.mrf.mxu0
    %v753 = vadd.f32 0.0, %v752
    %754 = vmatmul.bf16.gmra.mxu0 %v717
    %v755 = vpop.f32.mrf.mxu0
    %v756 = vadd.f32 0.0, %v755
    %v757 = vpop.f32.mrf.mxu0
    %v758 = vadd.f32 0.0, %v757
    %759 = vmatmul.bf16.gmra.mxu0 %v720
    %v760 = vpop.f32.mrf.mxu0
    %v761 = vadd.f32 0.0, %v760
    %v762 = vpop.f32.mrf.mxu0
    %v763 = vadd.f32 0.0, %v762
    %764 = vmatmul.bf16.gmra.mxu0 %v723
    %v765 = vpop.f32.mrf.mxu0
    %v766 = vadd.f32 0.0, %v765
    %v767 = vpop.f32.mrf.mxu0
    %v768 = vadd.f32 0.0, %v767
    %769 = vmatmul.bf16.gmra.mxu0 %v726
    %v770 = vpop.f32.mrf.mxu0
    %v771 = vadd.f32 0.0, %v770
    %v772 = vpop.f32.mrf.mxu0
    %v773 = vadd.f32 0.0, %v772
    %774 = vmatmul.bf16.gmra.mxu0 %v729
    %v775 = vpop.f32.mrf.mxu0
    %v776 = vadd.f32 0.0, %v775
    %v777 = vpop.f32.mrf.mxu0
    %v778 = vadd.f32 0.0, %v777
    %779 = vdwg.mxu0
    %v780 = vld [vmem:[#allocation9] sm:$0xff]
    %v781 = vld [vmem:[#allocation9 + $0x8] sm:$0xff]
    %v782 = vld [vmem:[#allocation9 + $0x10] sm:$0xff]
    %v783 = vld [vmem:[#allocation9 + $0x18] sm:$0xff]
    %v784 = vld [vmem:[#allocation9 + $0x20] sm:$0xff]
    %v785 = vld [vmem:[#allocation9 + $0x28] sm:$0xff]
    %v786 = vld [vmem:[#allocation9 + $0x30] sm:$0xff]
    %v787 = vld [vmem:[#allocation9 + $0x38] sm:$0xff]
    %v788 = vld [vmem:[#allocation9 + $0x40] sm:$0xff]
    %v789 = vld [vmem:[#allocation9 + $0x48] sm:$0xff]
    %v790 = vld [vmem:[#allocation9 + $0x50] sm:$0xff]
    %v791 = vld [vmem:[#allocation9 + $0x58] sm:$0xff]
    %v792 = vld [vmem:[#allocation9 + $0x60] sm:$0xff]
    %v793 = vld [vmem:[#allocation9 + $0x68] sm:$0xff]
    %v794 = vld [vmem:[#allocation9 + $0x70] sm:$0xff]
    %v795 = vld [vmem:[#allocation9 + $0x78] sm:$0xff]
    %v796 = vmul.f32 %v741, %v780
    %v797 = vmul.f32 %v743, %v781
    %v798 = vmul.f32 %v746, %v782
    %v799 = vmul.f32 %v748, %v783
    %v800 = vmul.f32 %v751, %v784
    %v801 = vmul.f32 %v753, %v785
    %v802 = vmul.f32 %v756, %v786
    %v803 = vmul.f32 %v758, %v787
    %v804 = vmul.f32 %v761, %v788
    %v805 = vmul.f32 %v763, %v789
    %v806 = vmul.f32 %v766, %v790
    %v807 = vmul.f32 %v768, %v791
    %v808 = vmul.f32 %v771, %v792
    %v809 = vmul.f32 %v773, %v793
    %v810 = vmul.f32 %v776, %v794
    %v811 = vmul.f32 %v778, %v795
    %v812 = vadd.f32 %v796, %v800
    %v813 = vadd.f32 %v797, %v801
    %v814 = vadd.f32 %v798, %v802
    %v815 = vadd.f32 %v799, %v803
    %v816 = vadd.f32 %v812, %v804
    %v817 = vadd.f32 %v813, %v805
    %v818 = vadd.f32 %v814, %v806
    %v819 = vadd.f32 %v815, %v807
    %v820 = vadd.f32 %v816, %v808
    %v821 = vadd.f32 %v817, %v809
    %v822 = vadd.f32 %v818, %v810
    %v823 = vadd.f32 %v819, %v811
    %v824 = vadd.f32 %v820, %v290
    %v825 = vadd.f32 %v821, %v292
    %v826 = vadd.f32 %v822, %v295
    %v827 = vadd.f32 %v823, %v297
    %v828 = vld [vmem:[#allocation7] sm:$0x1]
    %v830 = vperm.slane %v828, 0
    %v832 = vadd.f32 %v824, %v830
    %v833 = vadd.f32 %v825, %v830
    %v834 = vadd.f32 %v826, %v830
    %v835 = vadd.f32 %v827, %v830
    %vm836 = vcmp.gt.f32.partialorder %v832, 0.0
    %vm837 = vcmp.gt.f32.partialorder %v833, 0.0
    %vm838 = vcmp.gt.f32.partialorder %v834, 0.0
    %vm839 = vcmp.gt.f32.partialorder %v835, 0.0
    %v840 = vmul.f32 %v832, 1.442695
    %v841 = vpow.pop %v840
    %v842 = vmul.f32 %v833, 1.442695
    %v843 = vpow.pop %v842
    %v844 = vmul.f32 %v834, 1.442695
    %v845 = vpow.pop %v844
    %v846 = vmul.f32 %v835, 1.442695
    %v847 = vpow.pop %v846
    %v848 = vsub.f32 %v841, 1.0
    %v849 = vsub.f32 %v843, 1.0
    %v850 = vsub.f32 %v845, 1.0
    %v851 = vsub.f32 %v847, 1.0
    %v852 = vsel %vm836, %v832, %v848
    %v853 = vsel %vm837, %v833, %v849
    %v854 = vsel %vm838, %v834, %v850
    %v855 = vsel %vm839, %v835, %v851
    %v856 = vpack.c.bf16 %v853, %v852
    %v857 = vpack.c.bf16 %v855, %v854
    %v858 = vld [vmem:[#allocation10] sm:$0xff]
    %v859 = vld [vmem:[#allocation10 + $0x8] sm:$0xff]
    %v860 = vld [vmem:[#allocation10 + $0x10] sm:$0xff]
    %v861 = vld [vmem:[#allocation10 + $0x18] sm:$0xff]
    %v862 = vld [vmem:[#allocation10 + $0x20] sm:$0xff]
    %v863 = vld [vmem:[#allocation10 + $0x28] sm:$0xff]
    %v864 = vld [vmem:[#allocation10 + $0x30] sm:$0xff]
    %v865 = vld [vmem:[#allocation10 + $0x38] sm:$0xff]
    %v866 = vld [vmem:[#allocation10 + $0x40] sm:$0xff]
    %v867 = vld [vmem:[#allocation10 + $0x48] sm:$0xff]
    %v868 = vld [vmem:[#allocation10 + $0x50] sm:$0xff]
    %v869 = vld [vmem:[#allocation10 + $0x58] sm:$0xff]
    %v870 = vld [vmem:[#allocation10 + $0x60] sm:$0xff]
    %v871 = vld [vmem:[#allocation10 + $0x68] sm:$0xff]
    %v872 = vld [vmem:[#allocation10 + $0x70] sm:$0xff]
    %v873 = vld [vmem:[#allocation10 + $0x78] sm:$0xff]
    %v874 = vld [vmem:[#allocation10 + $0x80] sm:$0xff]
    %v875 = vld [vmem:[#allocation10 + $0x88] sm:$0xff]
    %v876 = vld [vmem:[#allocation10 + $0x90] sm:$0xff]
    %v877 = vld [vmem:[#allocation10 + $0x98] sm:$0xff]
    %v878 = vld [vmem:[#allocation10 + $0xa0] sm:$0xff]
    %v879 = vld [vmem:[#allocation10 + $0xa8] sm:$0xff]
    %v880 = vld [vmem:[#allocation10 + $0xb0] sm:$0xff]
    %v881 = vld [vmem:[#allocation10 + $0xb8] sm:$0xff]
    %v882 = vld [vmem:[#allocation10 + $0xc0] sm:$0xff]
    %v883 = vld [vmem:[#allocation10 + $0xc8] sm:$0xff]
    %v884 = vld [vmem:[#allocation10 + $0xd0] sm:$0xff]
    %v885 = vld [vmem:[#allocation10 + $0xd8] sm:$0xff]
    %v886 = vld [vmem:[#allocation10 + $0xe0] sm:$0xff]
    %v887 = vld [vmem:[#allocation10 + $0xe8] sm:$0xff]
    %v888 = vld [vmem:[#allocation10 + $0xf0] sm:$0xff]
    %v889 = vld [vmem:[#allocation10 + $0xf8] sm:$0xff]
    %v922 = vunpack.c.l.b16 %v858
    %v923 = vunpack.c.h.b16 %v858
    %v924 = vunpack.c.l.b16 %v859
    %v925 = vunpack.c.h.b16 %v859
    %v926 = vunpack.c.l.b16 %v860
    %v927 = vunpack.c.h.b16 %v860
    %v928 = vunpack.c.l.b16 %v861
    %v929 = vunpack.c.h.b16 %v861
    %v930 = vunpack.c.l.b16 %v862
    %v931 = vunpack.c.h.b16 %v862
    %v932 = vunpack.c.l.b16 %v863
    %v933 = vunpack.c.h.b16 %v863
    %v934 = vunpack.c.l.b16 %v864
    %v935 = vunpack.c.h.b16 %v864
    %v936 = vunpack.c.l.b16 %v865
    %v937 = vunpack.c.h.b16 %v865
    %v938 = vunpack.c.l.b16 %v866
    %v939 = vunpack.c.h.b16 %v866
    %v940 = vunpack.c.l.b16 %v867
    %v941 = vunpack.c.h.b16 %v867
    %v942 = vunpack.c.l.b16 %v868
    %v943 = vunpack.c.h.b16 %v868
    %v944 = vunpack.c.l.b16 %v869
    %v945 = vunpack.c.h.b16 %v869
    %v946 = vunpack.c.l.b16 %v870
    %v947 = vunpack.c.h.b16 %v870
    %v948 = vunpack.c.l.b16 %v871
    %v949 = vunpack.c.h.b16 %v871
    %v950 = vunpack.c.l.b16 %v872
    %v951 = vunpack.c.h.b16 %v872
    %v952 = vunpack.c.l.b16 %v873
    %v953 = vunpack.c.h.b16 %v873
    %v954 = vunpack.c.l.b16 %v874
    %v955 = vunpack.c.h.b16 %v874
    %v956 = vunpack.c.l.b16 %v875
    %v957 = vunpack.c.h.b16 %v875
    %v958 = vunpack.c.l.b16 %v876
    %v959 = vunpack.c.h.b16 %v876
    %v960 = vunpack.c.l.b16 %v877
    %v961 = vunpack.c.h.b16 %v877
    %v962 = vunpack.c.l.b16 %v878
    %v963 = vunpack.c.h.b16 %v878
    %v964 = vunpack.c.l.b16 %v879
    %v965 = vunpack.c.h.b16 %v879
    %v966 = vunpack.c.l.b16 %v880
    %v967 = vunpack.c.h.b16 %v880
    %v968 = vunpack.c.l.b16 %v881
    %v969 = vunpack.c.h.b16 %v881
    %v970 = vunpack.c.l.b16 %v882
    %v971 = vunpack.c.h.b16 %v882
    %v972 = vunpack.c.l.b16 %v883
    %v973 = vunpack.c.h.b16 %v883
    %v974 = vunpack.c.l.b16 %v884
    %v975 = vunpack.c.h.b16 %v884
    %v976 = vunpack.c.l.b16 %v885
    %v977 = vunpack.c.h.b16 %v885
    %v978 = vunpack.c.l.b16 %v886
    %v979 = vunpack.c.h.b16 %v886
    %v980 = vunpack.c.l.b16 %v887
    %v981 = vunpack.c.h.b16 %v887
    %v982 = vunpack.c.l.b16 %v888
    %v983 = vunpack.c.h.b16 %v888
    %v984 = vunpack.c.l.b16 %v889
    %v985 = vunpack.c.h.b16 %v889
    %v986 = vpack.c.b16 %v926, %v922
    %v987 = vpack.c.b16 %v927, %v923
    %v988 = vpack.c.b16 %v928, %v924
    %v989 = vpack.c.b16 %v929, %v925
    %v990 = vpack.c.b16 %v934, %v930
    %v991 = vpack.c.b16 %v935, %v931
    %v992 = vpack.c.b16 %v936, %v932
    %v993 = vpack.c.b16 %v937, %v933
    %v994 = vpack.c.b16 %v942, %v938
    %v995 = vpack.c.b16 %v943, %v939
    %v996 = vpack.c.b16 %v944, %v940
    %v997 = vpack.c.b16 %v945, %v941
    %v998 = vpack.c.b16 %v950, %v946
    %v999 = vpack.c.b16 %v951, %v947
    %v1000 = vpack.c.b16 %v952, %v948
    %v1001 = vpack.c.b16 %v953, %v949
    %v1002 = vpack.c.b16 %v958, %v954
    %v1003 = vpack.c.b16 %v959, %v955
    %v1004 = vpack.c.b16 %v960, %v956
    %v1005 = vpack.c.b16 %v961, %v957
    %v1006 = vpack.c.b16 %v966, %v962
    %v1007 = vpack.c.b16 %v967, %v963
    %v1008 = vpack.c.b16 %v968, %v964
    %v1009 = vpack.c.b16 %v969, %v965
    %v1010 = vpack.c.b16 %v974, %v970
    %v1011 = vpack.c.b16 %v975, %v971
    %v1012 = vpack.c.b16 %v976, %v972
    %v1013 = vpack.c.b16 %v977, %v973
    %v1014 = vpack.c.b16 %v982, %v978
    %v1015 = vpack.c.b16 %v983, %v979
    %v1016 = vpack.c.b16 %v984, %v980
    %v1017 = vpack.c.b16 %v985, %v981
    %1050 = vmatpush.bf16.msra.mxu0 %v1014
    %1051 = vmatpush.bf16.msra.mxu0 %v1010
    %1052 = vmatpush.bf16.msra.mxu0 %v1006
    %1053 = vmatpush.bf16.msra.mxu0 %v1002
    %1054 = vmatpush.bf16.msra.mxu0 %v998
    %1055 = vmatpush.bf16.msra.mxu0 %v994
    %1056 = vmatpush.bf16.msra.mxu0 %v990
    %1057 = vmatpush.bf16.msra.mxu0 %v986
    %1058 = vmatmul.bf16.gmra.mxu0 %v856
    %v1059 = vpop.f32.mrf.mxu0
    %v1060 = vadd.f32 0.0, %v1059
    %v1061 = vpop.f32.mrf.mxu0
    %v1062 = vadd.f32 0.0, %v1061
    %1063 = vmatmul.bf16.gmra.mxu0 %v857
    %v1064 = vpop.f32.mrf.mxu0
    %v1065 = vadd.f32 0.0, %v1064
    %v1066 = vpop.f32.mrf.mxu0
    %v1067 = vadd.f32 0.0, %v1066
    %1068 = vdwg.mxu0
    %1069 = vmatpush.bf16.msra.mxu0 %v1015
    %1070 = vmatpush.bf16.msra.mxu0 %v1011
    %1071 = vmatpush.bf16.msra.mxu0 %v1007
    %1072 = vmatpush.bf16.msra.mxu0 %v1003
    %1073 = vmatpush.bf16.msra.mxu0 %v999
    %1074 = vmatpush.bf16.msra.mxu0 %v995
    %1075 = vmatpush.bf16.msra.mxu0 %v991
    %1076 = vmatpush.bf16.msra.mxu0 %v987
    %1077 = vmatmul.bf16.gmra.mxu0 %v856
    %v1078 = vpop.f32.mrf.mxu0
    %v1079 = vadd.f32 0.0, %v1078
    %v1080 = vpop.f32.mrf.mxu0
    %v1081 = vadd.f32 0.0, %v1080
    %1082 = vmatmul.bf16.gmra.mxu0 %v857
    %v1083 = vpop.f32.mrf.mxu0
    %v1084 = vadd.f32 0.0, %v1083
    %v1085 = vpop.f32.mrf.mxu0
    %v1086 = vadd.f32 0.0, %v1085
    %1087 = vdwg.mxu0
    %1088 = vmatpush.bf16.msra.mxu0 %v1016
    %1089 = vmatpush.bf16.msra.mxu0 %v1012
    %1090 = vmatpush.bf16.msra.mxu0 %v1008
    %1091 = vmatpush.bf16.msra.mxu0 %v1004
    %1092 = vmatpush.bf16.msra.mxu0 %v1000
    %1093 = vmatpush.bf16.msra.mxu0 %v996
    %1094 = vmatpush.bf16.msra.mxu0 %v992
    %1095 = vmatpush.bf16.msra.mxu0 %v988
    %1096 = vmatmul.bf16.gmra.mxu0 %v856
    %v1097 = vpop.f32.mrf.mxu0
    %v1098 = vadd.f32 0.0, %v1097
    %v1099 = vpop.f32.mrf.mxu0
    %v1100 = vadd.f32 0.0, %v1099
    %1101 = vmatmul.bf16.gmra.mxu0 %v857
    %v1102 = vpop.f32.mrf.mxu0
    %v1103 = vadd.f32 0.0, %v1102
    %v1104 = vpop.f32.mrf.mxu0
    %v1105 = vadd.f32 0.0, %v1104
    %1106 = vdwg.mxu0
    %1107 = vmatpush.bf16.msra.mxu0 %v1017
    %1108 = vmatpush.bf16.msra.mxu0 %v1013
    %1109 = vmatpush.bf16.msra.mxu0 %v1009
    %1110 = vmatpush.bf16.msra.mxu0 %v1005
    %1111 = vmatpush.bf16.msra.mxu0 %v1001
    %1112 = vmatpush.bf16.msra.mxu0 %v997
    %1113 = vmatpush.bf16.msra.mxu0 %v993
    %1114 = vmatpush.bf16.msra.mxu0 %v989
    %1115 = vmatmul.bf16.gmra.mxu0 %v856
    %v1116 = vpop.f32.mrf.mxu0
    %v1117 = vadd.f32 0.0, %v1116
    %v1118 = vpop.f32.mrf.mxu0
    %v1119 = vadd.f32 0.0, %v1118
    %1120 = vmatmul.bf16.gmra.mxu0 %v857
    %v1121 = vpop.f32.mrf.mxu0
    %v1122 = vadd.f32 0.0, %v1121
    %v1123 = vpop.f32.mrf.mxu0
    %v1124 = vadd.f32 0.0, %v1123
    %1125 = vdwg.mxu0
    %v1126 = vpack.c.bf16 %v1062, %v1060
    %v1127 = vpack.c.bf16 %v1067, %v1065
    %1128 = vxpose.xlu0.b32.start [1/16] %v1117, 128
    %1129 = vxpose.xlu0.b32.cont [2/16] %v1119, 128
    %1130 = vxpose.xlu0.b32.cont [3/16] %v1122, 128
    %1131 = vxpose.xlu0.b32.cont [4/16] %v1124, 128
    %1132 = vxpose.xlu0.b32.cont [5/16] 0.0, 128
    %1133 = vxpose.xlu0.b32.cont [6/16] 0.0, 128
    %1134 = vxpose.xlu0.b32.cont [7/16] 0.0, 128
    %1135 = vxpose.xlu0.b32.cont [8/16] 0.0, 128
    %1136 = vxpose.xlu0.b32.cont [9/16] 0.0, 128
    %1137 = vxpose.xlu0.b32.cont [10/16] 0.0, 128
    %1138 = vxpose.xlu0.b32.cont [11/16] 0.0, 128
    %1139 = vxpose.xlu0.b32.cont [12/16] 0.0, 128
    %1140 = vxpose.xlu0.b32.cont [13/16] 0.0, 128
    %1141 = vxpose.xlu0.b32.cont [14/16] 0.0, 128
    %1142 = vxpose.xlu0.b32.cont [15/16] 0.0, 128
    %1143 = vxpose.xlu0.b32.end [16/16] 0.0, 128
    %v1144 = vpop.trf.xlu0
    %v1145 = vpop.trf.xlu0
    %v1146 = vpop.trf.xlu0
    %v1147 = vpop.trf.xlu0
    %v1148 = vpop.trf.xlu0
    %v1149 = vpop.trf.xlu0
    %v1150 = vpop.trf.xlu0
    %v1151 = vpop.trf.xlu0
    %v1152 = vpop.trf.xlu0
    %v1153 = vpop.trf.xlu0
    %v1154 = vpop.trf.xlu0
    %v1155 = vpop.trf.xlu0
    %v1156 = vpop.trf.xlu0
    %v1157 = vpop.trf.xlu0
    %v1158 = vpop.trf.xlu0
    %v1159 = vpop.trf.xlu0
    %1161 = vset.pattern.permute.xlu0 0
    %1162 = vperm.xlu0 %1161, %v1098
    %v1163 = vpop.permute.xlu0 %1162
    %1166 = vset.pattern.permute.xlu0 0
    %1167 = vperm.xlu0 %1166, %v1100
    %v1168 = vpop.permute.xlu0 %1167
    %1171 = vset.pattern.permute.xlu0 0
    %1172 = vperm.xlu0 %1171, %v1103
    %v1173 = vpop.permute.xlu0 %1172
    %1176 = vset.pattern.permute.xlu0 0
    %1177 = vperm.xlu0 %1176, %v1105
    %v1178 = vpop.permute.xlu0 %1177
    %v1180 = vperm.slane %v1144, 0
    %v1181 = vadd.f32 %v1163, %v1180
    %v1182 = vadd.f32 %v1168, %v1180
    %v1183 = vadd.f32 %v1173, %v1180
    %v1184 = vadd.f32 %v1178, %v1180
    %1185 = vset.pattern.permute.xlu0 1
    %1186 = vperm.xlu0 %1185, %v1098
    %v1187 = vpop.permute.xlu0 %1186
    %1189 = vset.pattern.permute.xlu0 1
    %1190 = vperm.xlu0 %1189, %v1100
    %v1191 = vpop.permute.xlu0 %1190
    %1193 = vset.pattern.permute.xlu0 1
    %1194 = vperm.xlu0 %1193, %v1103
    %v1195 = vpop.permute.xlu0 %1194
    %1197 = vset.pattern.permute.xlu0 1
    %1198 = vperm.xlu0 %1197, %v1105
    %v1199 = vpop.permute.xlu0 %1198
    %v1201 = vperm.slane %v1144, 1
    %v1202 = vadd.f32 %v1187, %v1201
    %v1203 = vadd.f32 %v1191, %v1201
    %v1204 = vadd.f32 %v1195, %v1201
    %v1205 = vadd.f32 %v1199, %v1201
    %1206 = vset.pattern.permute.xlu0 2
    %1207 = vperm.xlu0 %1206, %v1098
    %v1208 = vpop.permute.xlu0 %1207
    %1210 = vset.pattern.permute.xlu0 2
    %1211 = vperm.xlu0 %1210, %v1100
    %v1212 = vpop.permute.xlu0 %1211
    %1214 = vset.pattern.permute.xlu0 2
    %1215 = vperm.xlu0 %1214, %v1103
    %v1216 = vpop.permute.xlu0 %1215
    %1218 = vset.pattern.permute.xlu0 2
    %1219 = vperm.xlu0 %1218, %v1105
    %v1220 = vpop.permute.xlu0 %1219
    %v1222 = vperm.slane %v1144, 2
    %v1223 = vadd.f32 %v1208, %v1222
    %v1224 = vadd.f32 %v1212, %v1222
    %v1225 = vadd.f32 %v1216, %v1222
    %v1226 = vadd.f32 %v1220, %v1222
    %1227 = vset.pattern.permute.xlu0 3
    %1228 = vperm.xlu0 %1227, %v1098
    %v1229 = vpop.permute.xlu0 %1228
    %1231 = vset.pattern.permute.xlu0 3
    %1232 = vperm.xlu0 %1231, %v1100
    %v1233 = vpop.permute.xlu0 %1232
    %1235 = vset.pattern.permute.xlu0 3
    %1236 = vperm.xlu0 %1235, %v1103
    %v1237 = vpop.permute.xlu0 %1236
    %1239 = vset.pattern.permute.xlu0 3
    %1240 = vperm.xlu0 %1239, %v1105
    %v1241 = vpop.permute.xlu0 %1240
    %v1243 = vperm.slane %v1144, 3
    %v1244 = vadd.f32 %v1229, %v1243
    %v1245 = vadd.f32 %v1233, %v1243
    %v1246 = vadd.f32 %v1237, %v1243
    %v1247 = vadd.f32 %v1241, %v1243
    %vm1248 = vcmp.gt.f32.partialorder %v1181, 0.0
    %vm1249 = vcmp.gt.f32.partialorder %v1182, 0.0
    %vm1250 = vcmp.gt.f32.partialorder %v1183, 0.0
    %vm1251 = vcmp.gt.f32.partialorder %v1184, 0.0
    %vm1252 = vcmp.gt.f32.partialorder %v1202, 0.0
    %vm1253 = vcmp.gt.f32.partialorder %v1203, 0.0
    %vm1254 = vcmp.gt.f32.partialorder %v1204, 0.0
    %vm1255 = vcmp.gt.f32.partialorder %v1205, 0.0
    %vm1256 = vcmp.gt.f32.partialorder %v1223, 0.0
    %vm1257 = vcmp.gt.f32.partialorder %v1224, 0.0
    %vm1258 = vcmp.gt.f32.partialorder %v1225, 0.0
    %vm1259 = vcmp.gt.f32.partialorder %v1226, 0.0
    %vm1260 = vcmp.gt.f32.partialorder %v1244, 0.0
    %vm1261 = vcmp.gt.f32.partialorder %v1245, 0.0
    %vm1262 = vcmp.gt.f32.partialorder %v1246, 0.0
    %vm1263 = vcmp.gt.f32.partialorder %v1247, 0.0
    %v1264 = vmul.f32 %v1181, 0.2
    %v1265 = vmul.f32 %v1182, 0.2
    %v1266 = vmul.f32 %v1183, 0.2
    %v1267 = vmul.f32 %v1184, 0.2
    %v1268 = vmul.f32 %v1202, 0.2
    %v1269 = vmul.f32 %v1203, 0.2
    %v1270 = vmul.f32 %v1204, 0.2
    %v1271 = vmul.f32 %v1205, 0.2
    %v1272 = vmul.f32 %v1223, 0.2
    %v1273 = vmul.f32 %v1224, 0.2
    %v1274 = vmul.f32 %v1225, 0.2
    %v1275 = vmul.f32 %v1226, 0.2
    %v1276 = vmul.f32 %v1244, 0.2
    %v1277 = vmul.f32 %v1245, 0.2
    %v1278 = vmul.f32 %v1246, 0.2
    %v1279 = vmul.f32 %v1247, 0.2
    %v1280 = vsel %vm1248, %v1181, %v1264
    %v1281 = vsel %vm1249, %v1182, %v1265
    %v1282 = vsel %vm1250, %v1183, %v1266
    %v1283 = vsel %vm1251, %v1184, %v1267
    %v1284 = vsel %vm1252, %v1202, %v1268
    %v1285 = vsel %vm1253, %v1203, %v1269
    %v1286 = vsel %vm1254, %v1204, %v1270
    %v1287 = vsel %vm1255, %v1205, %v1271
    %v1288 = vsel %vm1256, %v1223, %v1272
    %v1289 = vsel %vm1257, %v1224, %v1273
    %v1290 = vsel %vm1258, %v1225, %v1274
    %v1291 = vsel %vm1259, %v1226, %v1275
    %v1292 = vsel %vm1260, %v1244, %v1276
    %v1293 = vsel %vm1261, %v1245, %v1277
    %v1294 = vsel %vm1262, %v1246, %v1278
    %v1295 = vsel %vm1263, %v1247, %v1279
    %v1296 = vadd.f32 %v1280, %v196
    %v1297 = vadd.f32 %v1281, %v197
    %v1298 = vadd.f32 %v1282, %v198
    %v1299 = vadd.f32 %v1283, %v199
    %v1300 = vadd.f32 %v1284, %v196
    %v1301 = vadd.f32 %v1285, %v197
    %v1302 = vadd.f32 %v1286, %v198
    %v1303 = vadd.f32 %v1287, %v199
    %v1304 = vadd.f32 %v1288, %v196
    %v1305 = vadd.f32 %v1289, %v197
    %v1306 = vadd.f32 %v1290, %v198
    %v1307 = vadd.f32 %v1291, %v199
    %v1308 = vadd.f32 %v1292, %v196
    %v1309 = vadd.f32 %v1293, %v197
    %v1310 = vadd.f32 %v1294, %v198
    %v1311 = vadd.f32 %v1295, %v199
    %v1312 = vsel %vm254, %v1296, -inf
    %1313 = vmax.xlane.f32.xlu0 %v1312
    %v1314 = vpop.xlane.xlu0 %1313
    %v1315 = vsel %vm254, %v1297, -inf
    %1316 = vmax.xlane.f32.xlu0 %v1315
    %v1317 = vpop.xlane.xlu0 %1316
    %v1318 = vsel %vm254, %v1298, -inf
    %1319 = vmax.xlane.f32.xlu0 %v1318
    %v1320 = vpop.xlane.xlu0 %1319
    %v1321 = vsel %vm254, %v1299, -inf
    %1322 = vmax.xlane.f32.xlu0 %v1321
    %v1323 = vpop.xlane.xlu0 %1322
    %v1324 = vsel %vm254, %v1300, -inf
    %1325 = vmax.xlane.f32.xlu0 %v1324
    %v1326 = vpop.xlane.xlu0 %1325
    %v1327 = vsel %vm254, %v1301, -inf
    %1328 = vmax.xlane.f32.xlu0 %v1327
    %v1329 = vpop.xlane.xlu0 %1328
    %v1330 = vsel %vm254, %v1302, -inf
    %1331 = vmax.xlane.f32.xlu0 %v1330
    %v1332 = vpop.xlane.xlu0 %1331
    %v1333 = vsel %vm254, %v1303, -inf
    %1334 = vmax.xlane.f32.xlu0 %v1333
    %v1335 = vpop.xlane.xlu0 %1334
    %v1336 = vsel %vm254, %v1304, -inf
    %1337 = vmax.xlane.f32.xlu0 %v1336
    %v1338 = vpop.xlane.xlu0 %1337
    %v1339 = vsel %vm254, %v1305, -inf
    %1340 = vmax.xlane.f32.xlu0 %v1339
    %v1341 = vpop.xlane.xlu0 %1340
    %v1342 = vsel %vm254, %v1306, -inf
    %1343 = vmax.xlane.f32.xlu0 %v1342
    %v1344 = vpop.xlane.xlu0 %1343
    %v1345 = vsel %vm254, %v1307, -inf
    %1346 = vmax.xlane.f32.xlu0 %v1345
    %v1347 = vpop.xlane.xlu0 %1346
    %v1348 = vsel %vm254, %v1308, -inf
    %1349 = vmax.xlane.f32.xlu0 %v1348
    %v1350 = vpop.xlane.xlu0 %1349
    %v1351 = vsel %vm254, %v1309, -inf
    %1352 = vmax.xlane.f32.xlu0 %v1351
    %v1353 = vpop.xlane.xlu0 %1352
    %v1354 = vsel %vm254, %v1310, -inf
    %1355 = vmax.xlane.f32.xlu0 %v1354
    %v1356 = vpop.xlane.xlu0 %1355
    %v1357 = vsel %vm254, %v1311, -inf
    %1358 = vmax.xlane.f32.xlu0 %v1357
    %v1359 = vpop.xlane.xlu0 %1358
    %v1360 = vsub.f32 %v1296, %v1314
    %v1361 = vsub.f32 %v1297, %v1317
    %v1362 = vsub.f32 %v1298, %v1320
    %v1363 = vsub.f32 %v1299, %v1323
    %v1364 = vsub.f32 %v1300, %v1326
    %v1365 = vsub.f32 %v1301, %v1329
    %v1366 = vsub.f32 %v1302, %v1332
    %v1367 = vsub.f32 %v1303, %v1335
    %v1368 = vsub.f32 %v1304, %v1338
    %v1369 = vsub.f32 %v1305, %v1341
    %v1370 = vsub.f32 %v1306, %v1344
    %v1371 = vsub.f32 %v1307, %v1347
    %v1372 = vsub.f32 %v1308, %v1350
    %v1373 = vsub.f32 %v1309, %v1353
    %v1374 = vsub.f32 %v1310, %v1356
    %v1375 = vsub.f32 %v1311, %v1359
    %v1376 = vmul.f32 %v1360, 1.442695
    %v1377 = vpow.pop %v1376
    %v1378 = vmul.f32 %v1361, 1.442695
    %v1379 = vpow.pop %v1378
    %v1380 = vmul.f32 %v1362, 1.442695
    %v1381 = vpow.pop %v1380
    %v1382 = vmul.f32 %v1363, 1.442695
    %v1383 = vpow.pop %v1382
    %v1384 = vmul.f32 %v1364, 1.442695
    %v1385 = vpow.pop %v1384
    %v1386 = vmul.f32 %v1365, 1.442695
    %v1387 = vpow.pop %v1386
    %v1388 = vmul.f32 %v1366, 1.442695
    %v1389 = vpow.pop %v1388
    %v1390 = vmul.f32 %v1367, 1.442695
    %v1391 = vpow.pop %v1390
    %v1392 = vmul.f32 %v1368, 1.442695
    %v1393 = vpow.pop %v1392
    %v1394 = vmul.f32 %v1369, 1.442695
    %v1395 = vpow.pop %v1394
    %v1396 = vmul.f32 %v1370, 1.442695
    %v1397 = vpow.pop %v1396
    %v1398 = vmul.f32 %v1371, 1.442695
    %v1399 = vpow.pop %v1398
    %v1400 = vmul.f32 %v1372, 1.442695
    %v1401 = vpow.pop %v1400
    %v1402 = vmul.f32 %v1373, 1.442695
    %v1403 = vpow.pop %v1402
    %v1404 = vmul.f32 %v1374, 1.442695
    %v1405 = vpow.pop %v1404
    %v1406 = vmul.f32 %v1375, 1.442695
    %v1407 = vpow.pop %v1406
    %v1408 = vsel %vm254, %v1377, 0.0
    %1409 = vadd.xlane.f32.xlu0 %v1408
    %v1410 = vpop.xlane.xlu0 %1409
    %v1411 = vsel %vm254, %v1379, 0.0
    %1412 = vadd.xlane.f32.xlu0 %v1411
    %v1413 = vpop.xlane.xlu0 %1412
    %v1414 = vsel %vm254, %v1381, 0.0
    %1415 = vadd.xlane.f32.xlu0 %v1414
    %v1416 = vpop.xlane.xlu0 %1415
    %v1417 = vsel %vm254, %v1383, 0.0
    %1418 = vadd.xlane.f32.xlu0 %v1417
    %v1419 = vpop.xlane.xlu0 %1418
    %v1420 = vsel %vm254, %v1385, 0.0
    %1421 = vadd.xlane.f32.xlu0 %v1420
    %v1422 = vpop.xlane.xlu0 %1421
    %v1423 = vsel %vm254, %v1387, 0.0
    %1424 = vadd.xlane.f32.xlu0 %v1423
    %v1425 = vpop.xlane.xlu0 %1424
    %v1426 = vsel %vm254, %v1389, 0.0
    %1427 = vadd.xlane.f32.xlu0 %v1426
    %v1428 = vpop.xlane.xlu0 %1427
    %v1429 = vsel %vm254, %v1391, 0.0
    %1430 = vadd.xlane.f32.xlu0 %v1429
    %v1431 = vpop.xlane.xlu0 %1430
    %v1432 = vsel %vm254, %v1393, 0.0
    %1433 = vadd.xlane.f32.xlu0 %v1432
    %v1434 = vpop.xlane.xlu0 %1433
    %v1435 = vsel %vm254, %v1395, 0.0
    %1436 = vadd.xlane.f32.xlu0 %v1435
    %v1437 = vpop.xlane.xlu0 %1436
    %v1438 = vsel %vm254, %v1397, 0.0
    %1439 = vadd.xlane.f32.xlu0 %v1438
    %v1440 = vpop.xlane.xlu0 %1439
    %v1441 = vsel %vm254, %v1399, 0.0
    %1442 = vadd.xlane.f32.xlu0 %v1441
    %v1443 = vpop.xlane.xlu0 %1442
    %v1444 = vsel %vm254, %v1401, 0.0
    %1445 = vadd.xlane.f32.xlu0 %v1444
    %v1446 = vpop.xlane.xlu0 %1445
    %v1447 = vsel %vm254, %v1403, 0.0
    %1448 = vadd.xlane.f32.xlu0 %v1447
    %v1449 = vpop.xlane.xlu0 %1448
    %v1450 = vsel %vm254, %v1405, 0.0
    %1451 = vadd.xlane.f32.xlu0 %v1450
    %v1452 = vpop.xlane.xlu0 %1451
    %v1453 = vsel %vm254, %v1407, 0.0
    %1454 = vadd.xlane.f32.xlu0 %v1453
    %v1455 = vpop.xlane.xlu0 %1454
    %v1456 = vrcp.pop %v1410
    %v1457 = vrcp.pop %v1413
    %v1458 = vrcp.pop %v1416
    %v1459 = vrcp.pop %v1419
    %v1460 = vrcp.pop %v1422
    %v1461 = vrcp.pop %v1425
    %v1462 = vrcp.pop %v1428
    %v1463 = vrcp.pop %v1431
    %v1464 = vrcp.pop %v1434
    %v1465 = vrcp.pop %v1437
    %v1466 = vrcp.pop %v1440
    %v1467 = vrcp.pop %v1443
    %v1468 = vrcp.pop %v1446
    %v1469 = vrcp.pop %v1449
    %v1470 = vrcp.pop %v1452
    %v1471 = vrcp.pop %v1455
    %v1472 = vmul.f32 %v1377, %v1456
    %v1473 = vmul.f32 %v1379, %v1457
    %v1474 = vmul.f32 %v1381, %v1458
    %v1475 = vmul.f32 %v1383, %v1459
    %v1476 = vmul.f32 %v1385, %v1460
    %v1477 = vmul.f32 %v1387, %v1461
    %v1478 = vmul.f32 %v1389, %v1462
    %v1479 = vmul.f32 %v1391, %v1463
    %v1480 = vmul.f32 %v1393, %v1464
    %v1481 = vmul.f32 %v1395, %v1465
    %v1482 = vmul.f32 %v1397, %v1466
    %v1483 = vmul.f32 %v1399, %v1467
    %v1484 = vmul.f32 %v1401, %v1468
    %v1485 = vmul.f32 %v1403, %v1469
    %v1486 = vmul.f32 %v1405, %v1470
    %v1487 = vmul.f32 %v1407, %v1471
    %v1488 = vpack.c.bf16 %v1473, %v1472
    %v1489 = vpack.c.bf16 %v1475, %v1474
    %v1490 = vpack.c.bf16 %v1477, %v1476
    %v1491 = vpack.c.bf16 %v1479, %v1478
    %v1492 = vpack.c.bf16 %v1481, %v1480
    %v1493 = vpack.c.bf16 %v1483, %v1482
    %v1494 = vpack.c.bf16 %v1485, %v1484
    %v1495 = vpack.c.bf16 %v1487, %v1486
    %v1497 = vsel %vm254, %v1488, 0
    %v1500 = vsel %vm254, %v1489, 0
    %v1503 = vsel %vm254, %v1490, 0
    %v1506 = vsel %vm254, %v1491, 0
    %v1509 = vsel %vm254, %v1492, 0
    %v1512 = vsel %vm254, %v1493, 0
    %v1515 = vsel %vm254, %v1494, 0
    %v1518 = vsel %vm254, %v1495, 0
    %1520 = vmatpush.bf16.msra.mxu0 0
    %1521 = vmatpush.bf16.msra.mxu0 0
    %1522 = vmatpush.bf16.msra.mxu0 0
    %1523 = vmatpush.bf16.msra.mxu0 0
    %1524 = vmatpush.bf16.msra.mxu0 0
    %1525 = vmatpush.bf16.msra.mxu0 0
    %1526 = vmatpush.bf16.msra.mxu0 %v1127
    %1527 = vmatpush.bf16.msra.mxu0 %v1126
    %1528 = vmatmul.bf16.gmra.mxu0 %v1497
    %v1529 = vpop.f32.mrf.mxu0
    %v1530 = vadd.f32 0.0, %v1529
    %v1531 = vpop.f32.mrf.mxu0
    %v1532 = vadd.f32 0.0, %v1531
    %1533 = vmatmul.bf16.gmra.mxu0 %v1500
    %v1534 = vpop.f32.mrf.mxu0
    %v1535 = vadd.f32 0.0, %v1534
    %v1536 = vpop.f32.mrf.mxu0
    %v1537 = vadd.f32 0.0, %v1536
    %1538 = vmatmul.bf16.gmra.mxu0 %v1503
    %v1539 = vpop.f32.mrf.mxu0
    %v1540 = vadd.f32 0.0, %v1539
    %v1541 = vpop.f32.mrf.mxu0
    %v1542 = vadd.f32 0.0, %v1541
    %1543 = vmatmul.bf16.gmra.mxu0 %v1506
    %v1544 = vpop.f32.mrf.mxu0
    %v1545 = vadd.f32 0.0, %v1544
    %v1546 = vpop.f32.mrf.mxu0
    %v1547 = vadd.f32 0.0, %v1546
    %1548 = vmatmul.bf16.gmra.mxu0 %v1509
    %v1549 = vpop.f32.mrf.mxu0
    %v1550 = vadd.f32 0.0, %v1549
    %v1551 = vpop.f32.mrf.mxu0
    %v1552 = vadd.f32 0.0, %v1551
    %1553 = vmatmul.bf16.gmra.mxu0 %v1512
    %v1554 = vpop.f32.mrf.mxu0
    %v1555 = vadd.f32 0.0, %v1554
    %v1556 = vpop.f32.mrf.mxu0
    %v1557 = vadd.f32 0.0, %v1556
    %1558 = vmatmul.bf16.gmra.mxu0 %v1515
    %v1559 = vpop.f32.mrf.mxu0
    %v1560 = vadd.f32 0.0, %v1559
    %v1561 = vpop.f32.mrf.mxu0
    %v1562 = vadd.f32 0.0, %v1561
    %1563 = vmatmul.bf16.gmra.mxu0 %v1518
    %v1564 = vpop.f32.mrf.mxu0
    %v1565 = vadd.f32 0.0, %v1564
    %v1566 = vpop.f32.mrf.mxu0
    %v1567 = vadd.f32 0.0, %v1566
    %1568 = vdwg.mxu0
    %v1569 = vld [vmem:[#allocation12] sm:$0xff]
    %v1570 = vld [vmem:[#allocation12 + $0x8] sm:$0xff]
    %v1571 = vld [vmem:[#allocation12 + $0x10] sm:$0xff]
    %v1572 = vld [vmem:[#allocation12 + $0x18] sm:$0xff]
    %v1573 = vld [vmem:[#allocation12 + $0x20] sm:$0xff]
    %v1574 = vld [vmem:[#allocation12 + $0x28] sm:$0xff]
    %v1575 = vld [vmem:[#allocation12 + $0x30] sm:$0xff]
    %v1576 = vld [vmem:[#allocation12 + $0x38] sm:$0xff]
    %v1577 = vld [vmem:[#allocation12 + $0x40] sm:$0xff]
    %v1578 = vld [vmem:[#allocation12 + $0x48] sm:$0xff]
    %v1579 = vld [vmem:[#allocation12 + $0x50] sm:$0xff]
    %v1580 = vld [vmem:[#allocation12 + $0x58] sm:$0xff]
    %v1581 = vld [vmem:[#allocation12 + $0x60] sm:$0xff]
    %v1582 = vld [vmem:[#allocation12 + $0x68] sm:$0xff]
    %v1583 = vld [vmem:[#allocation12 + $0x70] sm:$0xff]
    %v1584 = vld [vmem:[#allocation12 + $0x78] sm:$0xff]
    %v1585 = vmul.f32 %v1530, %v1569
    %v1586 = vmul.f32 %v1532, %v1570
    %v1587 = vmul.f32 %v1535, %v1571
    %v1588 = vmul.f32 %v1537, %v1572
    %v1589 = vmul.f32 %v1540, %v1573
    %v1590 = vmul.f32 %v1542, %v1574
    %v1591 = vmul.f32 %v1545, %v1575
    %v1592 = vmul.f32 %v1547, %v1576
    %v1593 = vmul.f32 %v1550, %v1577
    %v1594 = vmul.f32 %v1552, %v1578
    %v1595 = vmul.f32 %v1555, %v1579
    %v1596 = vmul.f32 %v1557, %v1580
    %v1597 = vmul.f32 %v1560, %v1581
    %v1598 = vmul.f32 %v1562, %v1582
    %v1599 = vmul.f32 %v1565, %v1583
    %v1600 = vmul.f32 %v1567, %v1584
    %v1601 = vadd.f32 %v1585, %v1589
    %v1602 = vadd.f32 %v1586, %v1590
    %v1603 = vadd.f32 %v1587, %v1591
    %v1604 = vadd.f32 %v1588, %v1592
    %v1605 = vadd.f32 %v1601, %v1593
    %v1606 = vadd.f32 %v1602, %v1594
    %v1607 = vadd.f32 %v1603, %v1595
    %v1608 = vadd.f32 %v1604, %v1596
    %v1609 = vadd.f32 %v1605, %v1597
    %v1610 = vadd.f32 %v1606, %v1598
    %v1611 = vadd.f32 %v1607, %v1599
    %v1612 = vadd.f32 %v1608, %v1600
    %v1613 = vadd.f32 %v1609, %v1079
    %v1614 = vadd.f32 %v1610, %v1081
    %v1615 = vadd.f32 %v1611, %v1084
    %v1616 = vadd.f32 %v1612, %v1086
    %v1617 = vld [vmem:[%s6] sm:$0x1]
    %v1619 = vperm.slane %v1617, 0
    %v1621 = vadd.f32 %v1613, %v1619
    %v1622 = vadd.f32 %v1614, %v1619
    %v1623 = vadd.f32 %v1615, %v1619
    %v1624 = vadd.f32 %v1616, %v1619
    %vm1625 = vcmp.gt.f32.partialorder %v1621, 0.0
    %vm1626 = vcmp.gt.f32.partialorder %v1622, 0.0
    %vm1627 = vcmp.gt.f32.partialorder %v1623, 0.0
    %vm1628 = vcmp.gt.f32.partialorder %v1624, 0.0
    %v1629 = vmul.f32 %v1621, 1.442695
    %v1630 = vpow.pop %v1629
    %v1631 = vmul.f32 %v1622, 1.442695
    %v1632 = vpow.pop %v1631
    %v1633 = vmul.f32 %v1623, 1.442695
    %v1634 = vpow.pop %v1633
    %v1635 = vmul.f32 %v1624, 1.442695
    %v1636 = vpow.pop %v1635
    %v1637 = vsub.f32 %v1630, 1.0
    %v1638 = vsub.f32 %v1632, 1.0
    %v1639 = vsub.f32 %v1634, 1.0
    %v1640 = vsub.f32 %v1636, 1.0
    %v1641 = vsel %vm1625, %v1621, %v1637
    %v1642 = vsel %vm1626, %v1622, %v1638
    %v1643 = vsel %vm1627, %v1623, %v1639
    %v1644 = vsel %vm1628, %v1624, %v1640
    %v1645 = vpack.c.bf16 %v1642, %v1641
    %v1646 = vpack.c.bf16 %v1644, %v1643
    %v1647 = vld [vmem:[#allocation13] sm:$0xff]
    %v1648 = vld [vmem:[#allocation13 + $0x8] sm:$0xff]
    %v1649 = vld [vmem:[#allocation13 + $0x10] sm:$0xff]
    %v1650 = vld [vmem:[#allocation13 + $0x18] sm:$0xff]
    %v1651 = vld [vmem:[#allocation13 + $0x20] sm:$0xff]
    %v1652 = vld [vmem:[#allocation13 + $0x28] sm:$0xff]
    %v1653 = vld [vmem:[#allocation13 + $0x30] sm:$0xff]
    %v1654 = vld [vmem:[#allocation13 + $0x38] sm:$0xff]
    %v1655 = vld [vmem:[#allocation13 + $0x40] sm:$0xff]
    %v1656 = vld [vmem:[#allocation13 + $0x48] sm:$0xff]
    %v1657 = vld [vmem:[#allocation13 + $0x50] sm:$0xff]
    %v1658 = vld [vmem:[#allocation13 + $0x58] sm:$0xff]
    %v1659 = vld [vmem:[#allocation13 + $0x60] sm:$0xff]
    %v1660 = vld [vmem:[#allocation13 + $0x68] sm:$0xff]
    %v1661 = vld [vmem:[#allocation13 + $0x70] sm:$0xff]
    %v1662 = vld [vmem:[#allocation13 + $0x78] sm:$0xff]
    %v1663 = vld [vmem:[#allocation13 + $0x80] sm:$0xff]
    %v1664 = vld [vmem:[#allocation13 + $0x88] sm:$0xff]
    %v1665 = vld [vmem:[#allocation13 + $0x90] sm:$0xff]
    %v1666 = vld [vmem:[#allocation13 + $0x98] sm:$0xff]
    %v1667 = vld [vmem:[#allocation13 + $0xa0] sm:$0xff]
    %v1668 = vld [vmem:[#allocation13 + $0xa8] sm:$0xff]
    %v1669 = vld [vmem:[#allocation13 + $0xb0] sm:$0xff]
    %v1670 = vld [vmem:[#allocation13 + $0xb8] sm:$0xff]
    %v1671 = vld [vmem:[#allocation13 + $0xc0] sm:$0xff]
    %v1672 = vld [vmem:[#allocation13 + $0xc8] sm:$0xff]
    %v1673 = vld [vmem:[#allocation13 + $0xd0] sm:$0xff]
    %v1674 = vld [vmem:[#allocation13 + $0xd8] sm:$0xff]
    %v1675 = vld [vmem:[#allocation13 + $0xe0] sm:$0xff]
    %v1676 = vld [vmem:[#allocation13 + $0xe8] sm:$0xff]
    %v1677 = vld [vmem:[#allocation13 + $0xf0] sm:$0xff]
    %v1678 = vld [vmem:[#allocation13 + $0xf8] sm:$0xff]
    %v1711 = vunpack.c.l.b16 %v1647
    %v1712 = vunpack.c.h.b16 %v1647
    %v1713 = vunpack.c.l.b16 %v1648
    %v1714 = vunpack.c.h.b16 %v1648
    %v1715 = vunpack.c.l.b16 %v1649
    %v1716 = vunpack.c.h.b16 %v1649
    %v1717 = vunpack.c.l.b16 %v1650
    %v1718 = vunpack.c.h.b16 %v1650
    %v1719 = vunpack.c.l.b16 %v1651
    %v1720 = vunpack.c.h.b16 %v1651
    %v1721 = vunpack.c.l.b16 %v1652
    %v1722 = vunpack.c.h.b16 %v1652
    %v1723 = vunpack.c.l.b16 %v1653
    %v1724 = vunpack.c.h.b16 %v1653
    %v1725 = vunpack.c.l.b16 %v1654
    %v1726 = vunpack.c.h.b16 %v1654
    %v1727 = vunpack.c.l.b16 %v1655
    %v1728 = vunpack.c.h.b16 %v1655
    %v1729 = vunpack.c.l.b16 %v1656
    %v1730 = vunpack.c.h.b16 %v1656
    %v1731 = vunpack.c.l.b16 %v1657
    %v1732 = vunpack.c.h.b16 %v1657
    %v1733 = vunpack.c.l.b16 %v1658
    %v1734 = vunpack.c.h.b16 %v1658
    %v1735 = vunpack.c.l.b16 %v1659
    %v1736 = vunpack.c.h.b16 %v1659
    %v1737 = vunpack.c.l.b16 %v1660
    %v1738 = vunpack.c.h.b16 %v1660
    %v1739 = vunpack.c.l.b16 %v1661
    %v1740 = vunpack.c.h.b16 %v1661
    %v1741 = vunpack.c.l.b16 %v1662
    %v1742 = vunpack.c.h.b16 %v1662
    %v1743 = vunpack.c.l.b16 %v1663
    %v1744 = vunpack.c.h.b16 %v1663
    %v1745 = vunpack.c.l.b16 %v1664
    %v1746 = vunpack.c.h.b16 %v1664
    %v1747 = vunpack.c.l.b16 %v1665
    %v1748 = vunpack.c.h.b16 %v1665
    %v1749 = vunpack.c.l.b16 %v1666
    %v1750 = vunpack.c.h.b16 %v1666
    %v1751 = vunpack.c.l.b16 %v1667
    %v1752 = vunpack.c.h.b16 %v1667
    %v1753 = vunpack.c.l.b16 %v1668
    %v1754 = vunpack.c.h.b16 %v1668
    %v1755 = vunpack.c.l.b16 %v1669
    %v1756 = vunpack.c.h.b16 %v1669
    %v1757 = vunpack.c.l.b16 %v1670
    %v1758 = vunpack.c.h.b16 %v1670
    %v1759 = vunpack.c.l.b16 %v1671
    %v1760 = vunpack.c.h.b16 %v1671
    %v1761 = vunpack.c.l.b16 %v1672
    %v1762 = vunpack.c.h.b16 %v1672
    %v1763 = vunpack.c.l.b16 %v1673
    %v1764 = vunpack.c.h.b16 %v1673
    %v1765 = vunpack.c.l.b16 %v1674
    %v1766 = vunpack.c.h.b16 %v1674
    %v1767 = vunpack.c.l.b16 %v1675
    %v1768 = vunpack.c.h.b16 %v1675
    %v1769 = vunpack.c.l.b16 %v1676
    %v1770 = vunpack.c.h.b16 %v1676
    %v1771 = vunpack.c.l.b16 %v1677
    %v1772 = vunpack.c.h.b16 %v1677
    %v1773 = vunpack.c.l.b16 %v1678
    %v1774 = vunpack.c.h.b16 %v1678
    %v1775 = vpack.c.b16 %v1715, %v1711
    %v1776 = vpack.c.b16 %v1716, %v1712
    %v1777 = vpack.c.b16 %v1717, %v1713
    %v1778 = vpack.c.b16 %v1718, %v1714
    %v1779 = vpack.c.b16 %v1723, %v1719
    %v1780 = vpack.c.b16 %v1724, %v1720
    %v1781 = vpack.c.b16 %v1725, %v1721
    %v1782 = vpack.c.b16 %v1726, %v1722
    %v1783 = vpack.c.b16 %v1731, %v1727
    %v1784 = vpack.c.b16 %v1732, %v1728
    %v1785 = vpack.c.b16 %v1733, %v1729
    %v1786 = vpack.c.b16 %v1734, %v1730
    %v1787 = vpack.c.b16 %v1739, %v1735
    %v1788 = vpack.c.b16 %v1740, %v1736
    %v1789 = vpack.c.b16 %v1741, %v1737
    %v1790 = vpack.c.b16 %v1742, %v1738
    %v1791 = vpack.c.b16 %v1747, %v1743
    %v1792 = vpack.c.b16 %v1748, %v1744
    %v1793 = vpack.c.b16 %v1749, %v1745
    %v1794 = vpack.c.b16 %v1750, %v1746
    %v1795 = vpack.c.b16 %v1755, %v1751
    %v1796 = vpack.c.b16 %v1756, %v1752
    %v1797 = vpack.c.b16 %v1757, %v1753
    %v1798 = vpack.c.b16 %v1758, %v1754
    %v1799 = vpack.c.b16 %v1763, %v1759
    %v1800 = vpack.c.b16 %v1764, %v1760
    %v1801 = vpack.c.b16 %v1765, %v1761
    %v1802 = vpack.c.b16 %v1766, %v1762
    %v1803 = vpack.c.b16 %v1771, %v1767
    %v1804 = vpack.c.b16 %v1772, %v1768
    %v1805 = vpack.c.b16 %v1773, %v1769
    %v1806 = vpack.c.b16 %v1774, %v1770
    %1839 = vmatpush.bf16.msra.mxu0 %v1803
    %1840 = vmatpush.bf16.msra.mxu0 %v1799
    %1841 = vmatpush.bf16.msra.mxu0 %v1795
    %1842 = vmatpush.bf16.msra.mxu0 %v1791
    %1843 = vmatpush.bf16.msra.mxu0 %v1787
    %1844 = vmatpush.bf16.msra.mxu0 %v1783
    %1845 = vmatpush.bf16.msra.mxu0 %v1779
    %1846 = vmatpush.bf16.msra.mxu0 %v1775
    %1847 = vmatmul.bf16.gmra.mxu0 %v1645
    %v1848 = vpop.f32.mrf.mxu0
    %v1849 = vadd.f32 0.0, %v1848
    %v1850 = vpop.f32.mrf.mxu0
    %v1851 = vadd.f32 0.0, %v1850
    %1852 = vmatmul.bf16.gmra.mxu0 %v1646
    %v1853 = vpop.f32.mrf.mxu0
    %v1854 = vadd.f32 0.0, %v1853
    %v1855 = vpop.f32.mrf.mxu0
    %v1856 = vadd.f32 0.0, %v1855
    %1857 = vdwg.mxu0
    %1858 = vmatpush.bf16.msra.mxu0 %v1804
    %1859 = vmatpush.bf16.msra.mxu0 %v1800
    %1860 = vmatpush.bf16.msra.mxu0 %v1796
    %1861 = vmatpush.bf16.msra.mxu0 %v1792
    %1862 = vmatpush.bf16.msra.mxu0 %v1788
    %1863 = vmatpush.bf16.msra.mxu0 %v1784
    %1864 = vmatpush.bf16.msra.mxu0 %v1780
    %1865 = vmatpush.bf16.msra.mxu0 %v1776
    %1866 = vmatmul.bf16.gmra.mxu0 %v1645
    %v1867 = vpop.f32.mrf.mxu0
    %v1868 = vadd.f32 0.0, %v1867
    %v1869 = vpop.f32.mrf.mxu0
    %v1870 = vadd.f32 0.0, %v1869
    %1871 = vmatmul.bf16.gmra.mxu0 %v1646
    %v1872 = vpop.f32.mrf.mxu0
    %v1873 = vadd.f32 0.0, %v1872
    %v1874 = vpop.f32.mrf.mxu0
    %v1875 = vadd.f32 0.0, %v1874
    %1876 = vdwg.mxu0
    %1877 = vmatpush.bf16.msra.mxu0 %v1805
    %1878 = vmatpush.bf16.msra.mxu0 %v1801
    %1879 = vmatpush.bf16.msra.mxu0 %v1797
    %1880 = vmatpush.bf16.msra.mxu0 %v1793
    %1881 = vmatpush.bf16.msra.mxu0 %v1789
    %1882 = vmatpush.bf16.msra.mxu0 %v1785
    %1883 = vmatpush.bf16.msra.mxu0 %v1781
    %1884 = vmatpush.bf16.msra.mxu0 %v1777
    %1885 = vmatmul.bf16.gmra.mxu0 %v1645
    %v1886 = vpop.f32.mrf.mxu0
    %v1887 = vadd.f32 0.0, %v1886
    %v1888 = vpop.f32.mrf.mxu0
    %v1889 = vadd.f32 0.0, %v1888
    %1890 = vmatmul.bf16.gmra.mxu0 %v1646
    %v1891 = vpop.f32.mrf.mxu0
    %v1892 = vadd.f32 0.0, %v1891
    %v1893 = vpop.f32.mrf.mxu0
    %v1894 = vadd.f32 0.0, %v1893
    %1895 = vdwg.mxu0
    %1896 = vmatpush.bf16.msra.mxu0 %v1806
    %1897 = vmatpush.bf16.msra.mxu0 %v1802
    %1898 = vmatpush.bf16.msra.mxu0 %v1798
    %1899 = vmatpush.bf16.msra.mxu0 %v1794
    %1900 = vmatpush.bf16.msra.mxu0 %v1790
    %1901 = vmatpush.bf16.msra.mxu0 %v1786
    %1902 = vmatpush.bf16.msra.mxu0 %v1782
    %1903 = vmatpush.bf16.msra.mxu0 %v1778
    %1904 = vmatmul.bf16.gmra.mxu0 %v1645
    %v1905 = vpop.f32.mrf.mxu0
    %v1906 = vadd.f32 0.0, %v1905
    %v1907 = vpop.f32.mrf.mxu0
    %v1908 = vadd.f32 0.0, %v1907
    %1909 = vmatmul.bf16.gmra.mxu0 %v1646
    %v1910 = vpop.f32.mrf.mxu0
    %v1911 = vadd.f32 0.0, %v1910
    %v1912 = vpop.f32.mrf.mxu0
    %v1913 = vadd.f32 0.0, %v1912
    %1914 = vdwg.mxu0
    %v1915 = vpack.c.bf16 %v1851, %v1849
    %v1916 = vpack.c.bf16 %v1856, %v1854
    %1917 = vxpose.xlu0.b32.start [1/16] %v1906, 128
    %1918 = vxpose.xlu0.b32.cont [2/16] %v1908, 128
    %1919 = vxpose.xlu0.b32.cont [3/16] %v1911, 128
    %1920 = vxpose.xlu0.b32.cont [4/16] %v1913, 128
    %1921 = vxpose.xlu0.b32.cont [5/16] 0.0, 128
    %1922 = vxpose.xlu0.b32.cont [6/16] 0.0, 128
    %1923 = vxpose.xlu0.b32.cont [7/16] 0.0, 128
    %1924 = vxpose.xlu0.b32.cont [8/16] 0.0, 128
    %1925 = vxpose.xlu0.b32.cont [9/16] 0.0, 128
    %1926 = vxpose.xlu0.b32.cont [10/16] 0.0, 128
    %1927 = vxpose.xlu0.b32.cont [11/16] 0.0, 128
    %1928 = vxpose.xlu0.b32.cont [12/16] 0.0, 128
    %1929 = vxpose.xlu0.b32.cont [13/16] 0.0, 128
    %1930 = vxpose.xlu0.b32.cont [14/16] 0.0, 128
    %1931 = vxpose.xlu0.b32.cont [15/16] 0.0, 128
    %1932 = vxpose.xlu0.b32.end [16/16] 0.0, 128
    %v1933 = vpop.trf.xlu0
    %v1934 = vpop.trf.xlu0
    %v1935 = vpop.trf.xlu0
    %v1936 = vpop.trf.xlu0
    %v1937 = vpop.trf.xlu0
    %v1938 = vpop.trf.xlu0
    %v1939 = vpop.trf.xlu0
    %v1940 = vpop.trf.xlu0
    %v1941 = vpop.trf.xlu0
    %v1942 = vpop.trf.xlu0
    %v1943 = vpop.trf.xlu0
    %v1944 = vpop.trf.xlu0
    %v1945 = vpop.trf.xlu0
    %v1946 = vpop.trf.xlu0
    %v1947 = vpop.trf.xlu0
    %v1948 = vpop.trf.xlu0
    %1950 = vset.pattern.permute.xlu0 0
    %1951 = vperm.xlu0 %1950, %v1887
    %v1952 = vpop.permute.xlu0 %1951
    %1955 = vset.pattern.permute.xlu0 0
    %1956 = vperm.xlu0 %1955, %v1889
    %v1957 = vpop.permute.xlu0 %1956
    %1960 = vset.pattern.permute.xlu0 0
    %1961 = vperm.xlu0 %1960, %v1892
    %v1962 = vpop.permute.xlu0 %1961
    %1965 = vset.pattern.permute.xlu0 0
    %1966 = vperm.xlu0 %1965, %v1894
    %v1967 = vpop.permute.xlu0 %1966
    %v1969 = vperm.slane %v1933, 0
    %v1970 = vadd.f32 %v1952, %v1969
    %v1971 = vadd.f32 %v1957, %v1969
    %v1972 = vadd.f32 %v1962, %v1969
    %v1973 = vadd.f32 %v1967, %v1969
    %1974 = vset.pattern.permute.xlu0 1
    %1975 = vperm.xlu0 %1974, %v1887
    %v1976 = vpop.permute.xlu0 %1975
    %1978 = vset.pattern.permute.xlu0 1
    %1979 = vperm.xlu0 %1978, %v1889
    %v1980 = vpop.permute.xlu0 %1979
    %1982 = vset.pattern.permute.xlu0 1
    %1983 = vperm.xlu0 %1982, %v1892
    %v1984 = vpop.permute.xlu0 %1983
    %1986 = vset.pattern.permute.xlu0 1
    %1987 = vperm.xlu0 %1986, %v1894
    %v1988 = vpop.permute.xlu0 %1987
    %v1990 = vperm.slane %v1933, 1
    %v1991 = vadd.f32 %v1976, %v1990
    %v1992 = vadd.f32 %v1980, %v1990
    %v1993 = vadd.f32 %v1984, %v1990
    %v1994 = vadd.f32 %v1988, %v1990
    %1995 = vset.pattern.permute.xlu0 2
    %1996 = vperm.xlu0 %1995, %v1887
    %v1997 = vpop.permute.xlu0 %1996
    %1999 = vset.pattern.permute.xlu0 2
    %2000 = vperm.xlu0 %1999, %v1889
    %v2001 = vpop.permute.xlu0 %2000
    %2003 = vset.pattern.permute.xlu0 2
    %2004 = vperm.xlu0 %2003, %v1892
    %v2005 = vpop.permute.xlu0 %2004
    %2007 = vset.pattern.permute.xlu0 2
    %2008 = vperm.xlu0 %2007, %v1894
    %v2009 = vpop.permute.xlu0 %2008
    %v2011 = vperm.slane %v1933, 2
    %v2012 = vadd.f32 %v1997, %v2011
    %v2013 = vadd.f32 %v2001, %v2011
    %v2014 = vadd.f32 %v2005, %v2011
    %v2015 = vadd.f32 %v2009, %v2011
    %2016 = vset.pattern.permute.xlu0 3
    %2017 = vperm.xlu0 %2016, %v1887
    %v2018 = vpop.permute.xlu0 %2017
    %2020 = vset.pattern.permute.xlu0 3
    %2021 = vperm.xlu0 %2020, %v1889
    %v2022 = vpop.permute.xlu0 %2021
    %2024 = vset.pattern.permute.xlu0 3
    %2025 = vperm.xlu0 %2024, %v1892
    %v2026 = vpop.permute.xlu0 %2025
    %2028 = vset.pattern.permute.xlu0 3
    %2029 = vperm.xlu0 %2028, %v1894
    %v2030 = vpop.permute.xlu0 %2029
    %v2032 = vperm.slane %v1933, 3
    %v2033 = vadd.f32 %v2018, %v2032
    %v2034 = vadd.f32 %v2022, %v2032
    %v2035 = vadd.f32 %v2026, %v2032
    %v2036 = vadd.f32 %v2030, %v2032
    %2037 = vset.pattern.permute.xlu0 4
    %2038 = vperm.xlu0 %2037, %v1887
    %v2039 = vpop.permute.xlu0 %2038
    %2041 = vset.pattern.permute.xlu0 4
    %2042 = vperm.xlu0 %2041, %v1889
    %v2043 = vpop.permute.xlu0 %2042
    %2045 = vset.pattern.permute.xlu0 4
    %2046 = vperm.xlu0 %2045, %v1892
    %v2047 = vpop.permute.xlu0 %2046
    %2049 = vset.pattern.permute.xlu0 4
    %2050 = vperm.xlu0 %2049, %v1894
    %v2051 = vpop.permute.xlu0 %2050
    %v2053 = vperm.slane %v1933, 4
    %v2054 = vadd.f32 %v2039, %v2053
    %v2055 = vadd.f32 %v2043, %v2053
    %v2056 = vadd.f32 %v2047, %v2053
    %v2057 = vadd.f32 %v2051, %v2053
    %2058 = vset.pattern.permute.xlu0 5
    %2059 = vperm.xlu0 %2058, %v1887
    %v2060 = vpop.permute.xlu0 %2059
    %2062 = vset.pattern.permute.xlu0 5
    %2063 = vperm.xlu0 %2062, %v1889
    %v2064 = vpop.permute.xlu0 %2063
    %2066 = vset.pattern.permute.xlu0 5
    %2067 = vperm.xlu0 %2066, %v1892
    %v2068 = vpop.permute.xlu0 %2067
    %2070 = vset.pattern.permute.xlu0 5
    %2071 = vperm.xlu0 %2070, %v1894
    %v2072 = vpop.permute.xlu0 %2071
    %v2074 = vperm.slane %v1933, 5
    %v2075 = vadd.f32 %v2060, %v2074
    %v2076 = vadd.f32 %v2064, %v2074
    %v2077 = vadd.f32 %v2068, %v2074
    %v2078 = vadd.f32 %v2072, %v2074
    %vm2079 = vcmp.gt.f32.partialorder %v1970, 0.0
    %vm2080 = vcmp.gt.f32.partialorder %v1971, 0.0
    %vm2081 = vcmp.gt.f32.partialorder %v1972, 0.0
    %vm2082 = vcmp.gt.f32.partialorder %v1973, 0.0
    %vm2083 = vcmp.gt.f32.partialorder %v1991, 0.0
    %vm2084 = vcmp.gt.f32.partialorder %v1992, 0.0
    %vm2085 = vcmp.gt.f32.partialorder %v1993, 0.0
    %vm2086 = vcmp.gt.f32.partialorder %v1994, 0.0
    %vm2087 = vcmp.gt.f32.partialorder %v2012, 0.0
    %vm2088 = vcmp.gt.f32.partialorder %v2013, 0.0
    %vm2089 = vcmp.gt.f32.partialorder %v2014, 0.0
    %vm2090 = vcmp.gt.f32.partialorder %v2015, 0.0
    %vm2091 = vcmp.gt.f32.partialorder %v2033, 0.0
    %vm2092 = vcmp.gt.f32.partialorder %v2034, 0.0
    %vm2093 = vcmp.gt.f32.partialorder %v2035, 0.0
    %vm2094 = vcmp.gt.f32.partialorder %v2036, 0.0
    %vm2095 = vcmp.gt.f32.partialorder %v2054, 0.0
    %vm2096 = vcmp.gt.f32.partialorder %v2055, 0.0
    %vm2097 = vcmp.gt.f32.partialorder %v2056, 0.0
    %vm2098 = vcmp.gt.f32.partialorder %v2057, 0.0
    %vm2099 = vcmp.gt.f32.partialorder %v2075, 0.0
    %vm2100 = vcmp.gt.f32.partialorder %v2076, 0.0
    %vm2101 = vcmp.gt.f32.partialorder %v2077, 0.0
    %vm2102 = vcmp.gt.f32.partialorder %v2078, 0.0
    %v2103 = vmul.f32 %v1970, 0.2
    %v2104 = vmul.f32 %v1971, 0.2
    %v2105 = vmul.f32 %v1972, 0.2
    %v2106 = vmul.f32 %v1973, 0.2
    %v2107 = vmul.f32 %v1991, 0.2
    %v2108 = vmul.f32 %v1992, 0.2
    %v2109 = vmul.f32 %v1993, 0.2
    %v2110 = vmul.f32 %v1994, 0.2
    %v2111 = vmul.f32 %v2012, 0.2
    %v2112 = vmul.f32 %v2013, 0.2
    %v2113 = vmul.f32 %v2014, 0.2
    %v2114 = vmul.f32 %v2015, 0.2
    %v2115 = vmul.f32 %v2033, 0.2
    %v2116 = vmul.f32 %v2034, 0.2
    %v2117 = vmul.f32 %v2035, 0.2
    %v2118 = vmul.f32 %v2036, 0.2
    %v2119 = vmul.f32 %v2054, 0.2
    %v2120 = vmul.f32 %v2055, 0.2
    %v2121 = vmul.f32 %v2056, 0.2
    %v2122 = vmul.f32 %v2057, 0.2
    %v2123 = vmul.f32 %v2075, 0.2
    %v2124 = vmul.f32 %v2076, 0.2
    %v2125 = vmul.f32 %v2077, 0.2
    %v2126 = vmul.f32 %v2078, 0.2
    %v2127 = vsel %vm2079, %v1970, %v2103
    %v2128 = vsel %vm2080, %v1971, %v2104
    %v2129 = vsel %vm2081, %v1972, %v2105
    %v2130 = vsel %vm2082, %v1973, %v2106
    %v2131 = vsel %vm2083, %v1991, %v2107
    %v2132 = vsel %vm2084, %v1992, %v2108
    %v2133 = vsel %vm2085, %v1993, %v2109
    %v2134 = vsel %vm2086, %v1994, %v2110
    %v2135 = vsel %vm2087, %v2012, %v2111
    %v2136 = vsel %vm2088, %v2013, %v2112
    %v2137 = vsel %vm2089, %v2014, %v2113
    %v2138 = vsel %vm2090, %v2015, %v2114
    %v2139 = vsel %vm2091, %v2033, %v2115
    %v2140 = vsel %vm2092, %v2034, %v2116
    %v2141 = vsel %vm2093, %v2035, %v2117
    %v2142 = vsel %vm2094, %v2036, %v2118
    %v2143 = vsel %vm2095, %v2054, %v2119
    %v2144 = vsel %vm2096, %v2055, %v2120
    %v2145 = vsel %vm2097, %v2056, %v2121
    %v2146 = vsel %vm2098, %v2057, %v2122
    %v2147 = vsel %vm2099, %v2075, %v2123
    %v2148 = vsel %vm2100, %v2076, %v2124
    %v2149 = vsel %vm2101, %v2077, %v2125
    %v2150 = vsel %vm2102, %v2078, %v2126
    %v2151 = vadd.f32 %v2127, %v196
    %v2152 = vadd.f32 %v2128, %v197
    %v2153 = vadd.f32 %v2129, %v198
    %v2154 = vadd.f32 %v2130, %v199
    %v2155 = vadd.f32 %v2131, %v196
    %v2156 = vadd.f32 %v2132, %v197
    %v2157 = vadd.f32 %v2133, %v198
    %v2158 = vadd.f32 %v2134, %v199
    %v2159 = vadd.f32 %v2135, %v196
    %v2160 = vadd.f32 %v2136, %v197
    %v2161 = vadd.f32 %v2137, %v198
    %v2162 = vadd.f32 %v2138, %v199
    %v2163 = vadd.f32 %v2139, %v196
    %v2164 = vadd.f32 %v2140, %v197
    %v2165 = vadd.f32 %v2141, %v198
    %v2166 = vadd.f32 %v2142, %v199
    %v2167 = vadd.f32 %v2143, %v196
    %v2168 = vadd.f32 %v2144, %v197
    %v2169 = vadd.f32 %v2145, %v198
    %v2170 = vadd.f32 %v2146, %v199
    %v2171 = vadd.f32 %v2147, %v196
    %v2172 = vadd.f32 %v2148, %v197
    %v2173 = vadd.f32 %v2149, %v198
    %v2174 = vadd.f32 %v2150, %v199
    %v2175 = vsel %vm254, %v2151, -inf
    %2176 = vmax.xlane.f32.xlu0 %v2175
    %v2177 = vpop.xlane.xlu0 %2176
    %v2178 = vsel %vm254, %v2152, -inf
    %2179 = vmax.xlane.f32.xlu0 %v2178
    %v2180 = vpop.xlane.xlu0 %2179
    %v2181 = vsel %vm254, %v2153, -inf
    %2182 = vmax.xlane.f32.xlu0 %v2181
    %v2183 = vpop.xlane.xlu0 %2182
    %v2184 = vsel %vm254, %v2154, -inf
    %2185 = vmax.xlane.f32.xlu0 %v2184
    %v2186 = vpop.xlane.xlu0 %2185
    %v2187 = vsel %vm254, %v2155, -inf
    %2188 = vmax.xlane.f32.xlu0 %v2187
    %v2189 = vpop.xlane.xlu0 %2188
    %v2190 = vsel %vm254, %v2156, -inf
    %2191 = vmax.xlane.f32.xlu0 %v2190
    %v2192 = vpop.xlane.xlu0 %2191
    %v2193 = vsel %vm254, %v2157, -inf
    %2194 = vmax.xlane.f32.xlu0 %v2193
    %v2195 = vpop.xlane.xlu0 %2194
    %v2196 = vsel %vm254, %v2158, -inf
    %2197 = vmax.xlane.f32.xlu0 %v2196
    %v2198 = vpop.xlane.xlu0 %2197
    %v2199 = vsel %vm254, %v2159, -inf
    %2200 = vmax.xlane.f32.xlu0 %v2199
    %v2201 = vpop.xlane.xlu0 %2200
    %v2202 = vsel %vm254, %v2160, -inf
    %2203 = vmax.xlane.f32.xlu0 %v2202
    %v2204 = vpop.xlane.xlu0 %2203
    %v2205 = vsel %vm254, %v2161, -inf
    %2206 = vmax.xlane.f32.xlu0 %v2205
    %v2207 = vpop.xlane.xlu0 %2206
    %v2208 = vsel %vm254, %v2162, -inf
    %2209 = vmax.xlane.f32.xlu0 %v2208
    %v2210 = vpop.xlane.xlu0 %2209
    %v2211 = vsel %vm254, %v2163, -inf
    %2212 = vmax.xlane.f32.xlu0 %v2211
    %v2213 = vpop.xlane.xlu0 %2212
    %v2214 = vsel %vm254, %v2164, -inf
    %2215 = vmax.xlane.f32.xlu0 %v2214
    %v2216 = vpop.xlane.xlu0 %2215
    %v2217 = vsel %vm254, %v2165, -inf
    %2218 = vmax.xlane.f32.xlu0 %v2217
    %v2219 = vpop.xlane.xlu0 %2218
    %v2220 = vsel %vm254, %v2166, -inf
    %2221 = vmax.xlane.f32.xlu0 %v2220
    %v2222 = vpop.xlane.xlu0 %2221
    %v2223 = vsel %vm254, %v2167, -inf
    %2224 = vmax.xlane.f32.xlu0 %v2223
    %v2225 = vpop.xlane.xlu0 %2224
    %v2226 = vsel %vm254, %v2168, -inf
    %2227 = vmax.xlane.f32.xlu0 %v2226
    %v2228 = vpop.xlane.xlu0 %2227
    %v2229 = vsel %vm254, %v2169, -inf
    %2230 = vmax.xlane.f32.xlu0 %v2229
    %v2231 = vpop.xlane.xlu0 %2230
    %v2232 = vsel %vm254, %v2170, -inf
    %2233 = vmax.xlane.f32.xlu0 %v2232
    %v2234 = vpop.xlane.xlu0 %2233
    %v2235 = vsel %vm254, %v2171, -inf
    %2236 = vmax.xlane.f32.xlu0 %v2235
    %v2237 = vpop.xlane.xlu0 %2236
    %v2238 = vsel %vm254, %v2172, -inf
    %2239 = vmax.xlane.f32.xlu0 %v2238
    %v2240 = vpop.xlane.xlu0 %2239
    %v2241 = vsel %vm254, %v2173, -inf
    %2242 = vmax.xlane.f32.xlu0 %v2241
    %v2243 = vpop.xlane.xlu0 %2242
    %v2244 = vsel %vm254, %v2174, -inf
    %2245 = vmax.xlane.f32.xlu0 %v2244
    %v2246 = vpop.xlane.xlu0 %2245
    %v2247 = vsub.f32 %v2151, %v2177
    %v2248 = vsub.f32 %v2152, %v2180
    %v2249 = vsub.f32 %v2153, %v2183
    %v2250 = vsub.f32 %v2154, %v2186
    %v2251 = vsub.f32 %v2155, %v2189
    %v2252 = vsub.f32 %v2156, %v2192
    %v2253 = vsub.f32 %v2157, %v2195
    %v2254 = vsub.f32 %v2158, %v2198
    %v2255 = vsub.f32 %v2159, %v2201
    %v2256 = vsub.f32 %v2160, %v2204
    %v2257 = vsub.f32 %v2161, %v2207
    %v2258 = vsub.f32 %v2162, %v2210
    %v2259 = vsub.f32 %v2163, %v2213
    %v2260 = vsub.f32 %v2164, %v2216
    %v2261 = vsub.f32 %v2165, %v2219
    %v2262 = vsub.f32 %v2166, %v2222
    %v2263 = vsub.f32 %v2167, %v2225
    %v2264 = vsub.f32 %v2168, %v2228
    %v2265 = vsub.f32 %v2169, %v2231
    %v2266 = vsub.f32 %v2170, %v2234
    %v2267 = vsub.f32 %v2171, %v2237
    %v2268 = vsub.f32 %v2172, %v2240
    %v2269 = vsub.f32 %v2173, %v2243
    %v2270 = vsub.f32 %v2174, %v2246
    %v2271 = vmul.f32 %v2247, 1.442695
    %v2272 = vpow.pop %v2271
    %v2273 = vmul.f32 %v2248, 1.442695
    %v2274 = vpow.pop %v2273
    %v2275 = vmul.f32 %v2249, 1.442695
    %v2276 = vpow.pop %v2275
    %v2277 = vmul.f32 %v2250, 1.442695
    %v2278 = vpow.pop %v2277
    %v2279 = vmul.f32 %v2251, 1.442695
    %v2280 = vpow.pop %v2279
    %v2281 = vmul.f32 %v2252, 1.442695
    %v2282 = vpow.pop %v2281
    %v2283 = vmul.f32 %v2253, 1.442695
    %v2284 = vpow.pop %v2283
    %v2285 = vmul.f32 %v2254, 1.442695
    %v2286 = vpow.pop %v2285
    %v2287 = vmul.f32 %v2255, 1.442695
    %v2288 = vpow.pop %v2287
    %v2289 = vmul.f32 %v2256, 1.442695
    %v2290 = vpow.pop %v2289
    %v2291 = vmul.f32 %v2257, 1.442695
    %v2292 = vpow.pop %v2291
    %v2293 = vmul.f32 %v2258, 1.442695
    %v2294 = vpow.pop %v2293
    %v2295 = vmul.f32 %v2259, 1.442695
    %v2296 = vpow.pop %v2295
    %v2297 = vmul.f32 %v2260, 1.442695
    %v2298 = vpow.pop %v2297
    %v2299 = vmul.f32 %v2261, 1.442695
    %v2300 = vpow.pop %v2299
    %v2301 = vmul.f32 %v2262, 1.442695
    %v2302 = vpow.pop %v2301
    %v2303 = vmul.f32 %v2263, 1.442695
    %v2304 = vpow.pop %v2303
    %v2305 = vmul.f32 %v2264, 1.442695
    %v2306 = vpow.pop %v2305
    %v2307 = vmul.f32 %v2265, 1.442695
    %v2308 = vpow.pop %v2307
    %v2309 = vmul.f32 %v2266, 1.442695
    %v2310 = vpow.pop %v2309
    %v2311 = vmul.f32 %v2267, 1.442695
    %v2312 = vpow.pop %v2311
    %v2313 = vmul.f32 %v2268, 1.442695
    %v2314 = vpow.pop %v2313
    %v2315 = vmul.f32 %v2269, 1.442695
    %v2316 = vpow.pop %v2315
    %v2317 = vmul.f32 %v2270, 1.442695
    %v2318 = vpow.pop %v2317
    %v2319 = vsel %vm254, %v2272, 0.0
    %2320 = vadd.xlane.f32.xlu0 %v2319
    %v2321 = vpop.xlane.xlu0 %2320
    %v2322 = vsel %vm254, %v2274, 0.0
    %2323 = vadd.xlane.f32.xlu0 %v2322
    %v2324 = vpop.xlane.xlu0 %2323
    %v2325 = vsel %vm254, %v2276, 0.0
    %2326 = vadd.xlane.f32.xlu0 %v2325
    %v2327 = vpop.xlane.xlu0 %2326
    %v2328 = vsel %vm254, %v2278, 0.0
    %2329 = vadd.xlane.f32.xlu0 %v2328
    %v2330 = vpop.xlane.xlu0 %2329
    %v2331 = vsel %vm254, %v2280, 0.0
    %2332 = vadd.xlane.f32.xlu0 %v2331
    %v2333 = vpop.xlane.xlu0 %2332
    %v2334 = vsel %vm254, %v2282, 0.0
    %2335 = vadd.xlane.f32.xlu0 %v2334
    %v2336 = vpop.xlane.xlu0 %2335
    %v2337 = vsel %vm254, %v2284, 0.0
    %2338 = vadd.xlane.f32.xlu0 %v2337
    %v2339 = vpop.xlane.xlu0 %2338
    %v2340 = vsel %vm254, %v2286, 0.0
    %2341 = vadd.xlane.f32.xlu0 %v2340
    %v2342 = vpop.xlane.xlu0 %2341
    %v2343 = vsel %vm254, %v2288, 0.0
    %2344 = vadd.xlane.f32.xlu0 %v2343
    %v2345 = vpop.xlane.xlu0 %2344
    %v2346 = vsel %vm254, %v2290, 0.0
    %2347 = vadd.xlane.f32.xlu0 %v2346
    %v2348 = vpop.xlane.xlu0 %2347
    %v2349 = vsel %vm254, %v2292, 0.0
    %2350 = vadd.xlane.f32.xlu0 %v2349
    %v2351 = vpop.xlane.xlu0 %2350
    %v2352 = vsel %vm254, %v2294, 0.0
    %2353 = vadd.xlane.f32.xlu0 %v2352
    %v2354 = vpop.xlane.xlu0 %2353
    %v2355 = vsel %vm254, %v2296, 0.0
    %2356 = vadd.xlane.f32.xlu0 %v2355
    %v2357 = vpop.xlane.xlu0 %2356
    %v2358 = vsel %vm254, %v2298, 0.0
    %2359 = vadd.xlane.f32.xlu0 %v2358
    %v2360 = vpop.xlane.xlu0 %2359
    %v2361 = vsel %vm254, %v2300, 0.0
    %2362 = vadd.xlane.f32.xlu0 %v2361
    %v2363 = vpop.xlane.xlu0 %2362
    %v2364 = vsel %vm254, %v2302, 0.0
    %2365 = vadd.xlane.f32.xlu0 %v2364
    %v2366 = vpop.xlane.xlu0 %2365
    %v2367 = vsel %vm254, %v2304, 0.0
    %2368 = vadd.xlane.f32.xlu0 %v2367
    %v2369 = vpop.xlane.xlu0 %2368
    %v2370 = vsel %vm254, %v2306, 0.0
    %2371 = vadd.xlane.f32.xlu0 %v2370
    %v2372 = vpop.xlane.xlu0 %2371
    %v2373 = vsel %vm254, %v2308, 0.0
    %2374 = vadd.xlane.f32.xlu0 %v2373
    %v2375 = vpop.xlane.xlu0 %2374
    %v2376 = vsel %vm254, %v2310, 0.0
    %2377 = vadd.xlane.f32.xlu0 %v2376
    %v2378 = vpop.xlane.xlu0 %2377
    %v2379 = vsel %vm254, %v2312, 0.0
    %2380 = vadd.xlane.f32.xlu0 %v2379
    %v2381 = vpop.xlane.xlu0 %2380
    %v2382 = vsel %vm254, %v2314, 0.0
    %2383 = vadd.xlane.f32.xlu0 %v2382
    %v2384 = vpop.xlane.xlu0 %2383
    %v2385 = vsel %vm254, %v2316, 0.0
    %2386 = vadd.xlane.f32.xlu0 %v2385
    %v2387 = vpop.xlane.xlu0 %2386
    %v2388 = vsel %vm254, %v2318, 0.0
    %2389 = vadd.xlane.f32.xlu0 %v2388
    %v2390 = vpop.xlane.xlu0 %2389
    %v2391 = vrcp.pop %v2321
    %v2392 = vrcp.pop %v2324
    %v2393 = vrcp.pop %v2327
    %v2394 = vrcp.pop %v2330
    %v2395 = vrcp.pop %v2333
    %v2396 = vrcp.pop %v2336
    %v2397 = vrcp.pop %v2339
    %v2398 = vrcp.pop %v2342
    %v2399 = vrcp.pop %v2345
    %v2400 = vrcp.pop %v2348
    %v2401 = vrcp.pop %v2351
    %v2402 = vrcp.pop %v2354
    %v2403 = vrcp.pop %v2357
    %v2404 = vrcp.pop %v2360
    %v2405 = vrcp.pop %v2363
    %v2406 = vrcp.pop %v2366
    %v2407 = vrcp.pop %v2369
    %v2408 = vrcp.pop %v2372
    %v2409 = vrcp.pop %v2375
    %v2410 = vrcp.pop %v2378
    %v2411 = vrcp.pop %v2381
    %v2412 = vrcp.pop %v2384
    %v2413 = vrcp.pop %v2387
    %v2414 = vrcp.pop %v2390
    %v2415 = vmul.f32 %v2272, %v2391
    %v2416 = vmul.f32 %v2274, %v2392
    %v2417 = vmul.f32 %v2276, %v2393
    %v2418 = vmul.f32 %v2278, %v2394
    %v2419 = vmul.f32 %v2280, %v2395
    %v2420 = vmul.f32 %v2282, %v2396
    %v2421 = vmul.f32 %v2284, %v2397
    %v2422 = vmul.f32 %v2286, %v2398
    %v2423 = vmul.f32 %v2288, %v2399
    %v2424 = vmul.f32 %v2290, %v2400
    %v2425 = vmul.f32 %v2292, %v2401
    %v2426 = vmul.f32 %v2294, %v2402
    %v2427 = vmul.f32 %v2296, %v2403
    %v2428 = vmul.f32 %v2298, %v2404
    %v2429 = vmul.f32 %v2300, %v2405
    %v2430 = vmul.f32 %v2302, %v2406
    %v2431 = vmul.f32 %v2304, %v2407
    %v2432 = vmul.f32 %v2306, %v2408
    %v2433 = vmul.f32 %v2308, %v2409
    %v2434 = vmul.f32 %v2310, %v2410
    %v2435 = vmul.f32 %v2312, %v2411
    %v2436 = vmul.f32 %v2314, %v2412
    %v2437 = vmul.f32 %v2316, %v2413
    %v2438 = vmul.f32 %v2318, %v2414
    %v2439 = vpack.c.bf16 %v2416, %v2415
    %v2440 = vpack.c.bf16 %v2418, %v2417
    %v2441 = vpack.c.bf16 %v2420, %v2419
    %v2442 = vpack.c.bf16 %v2422, %v2421
    %v2443 = vpack.c.bf16 %v2424, %v2423
    %v2444 = vpack.c.bf16 %v2426, %v2425
    %v2445 = vpack.c.bf16 %v2428, %v2427
    %v2446 = vpack.c.bf16 %v2430, %v2429
    %v2447 = vpack.c.bf16 %v2432, %v2431
    %v2448 = vpack.c.bf16 %v2434, %v2433
    %v2449 = vpack.c.bf16 %v2436, %v2435
    %v2450 = vpack.c.bf16 %v2438, %v2437
    %v2452 = vsel %vm254, %v2439, 0
    %v2455 = vsel %vm254, %v2440, 0
    %v2458 = vsel %vm254, %v2441, 0
    %v2461 = vsel %vm254, %v2442, 0
    %v2464 = vsel %vm254, %v2443, 0
    %v2467 = vsel %vm254, %v2444, 0
    %v2470 = vsel %vm254, %v2445, 0
    %v2473 = vsel %vm254, %v2446, 0
    %v2476 = vsel %vm254, %v2447, 0
    %v2479 = vsel %vm254, %v2448, 0
    %v2482 = vsel %vm254, %v2449, 0
    %v2485 = vsel %vm254, %v2450, 0
    %2487 = vmatpush.bf16.msra.mxu0 0
    %2488 = vmatpush.bf16.msra.mxu0 0
    %2489 = vmatpush.bf16.msra.mxu0 0
    %2490 = vmatpush.bf16.msra.mxu0 0
    %2491 = vmatpush.bf16.msra.mxu0 0
    %2492 = vmatpush.bf16.msra.mxu0 0
    %2493 = vmatpush.bf16.msra.mxu0 %v1916
    %2494 = vmatpush.bf16.msra.mxu0 %v1915
    %2495 = vmatmul.bf16.gmra.mxu0 %v2452
    %v2496 = vpop.f32.mrf.mxu0
    %v2497 = vadd.f32 0.0, %v2496
    %v2498 = vpop.f32.mrf.mxu0
    %v2499 = vadd.f32 0.0, %v2498
    %2500 = vmatmul.bf16.gmra.mxu0 %v2455
    %v2501 = vpop.f32.mrf.mxu0
    %v2502 = vadd.f32 0.0, %v2501
    %v2503 = vpop.f32.mrf.mxu0
    %v2504 = vadd.f32 0.0, %v2503
    %2505 = vmatmul.bf16.gmra.mxu0 %v2458
    %v2506 = vpop.f32.mrf.mxu0
    %v2507 = vadd.f32 0.0, %v2506
    %v2508 = vpop.f32.mrf.mxu0
    %v2509 = vadd.f32 0.0, %v2508
    %2510 = vmatmul.bf16.gmra.mxu0 %v2461
    %v2511 = vpop.f32.mrf.mxu0
    %v2512 = vadd.f32 0.0, %v2511
    %v2513 = vpop.f32.mrf.mxu0
    %v2514 = vadd.f32 0.0, %v2513
    %2515 = vmatmul.bf16.gmra.mxu0 %v2464
    %v2516 = vpop.f32.mrf.mxu0
    %v2517 = vadd.f32 0.0, %v2516
    %v2518 = vpop.f32.mrf.mxu0
    %v2519 = vadd.f32 0.0, %v2518
    %2520 = vmatmul.bf16.gmra.mxu0 %v2467
    %v2521 = vpop.f32.mrf.mxu0
    %v2522 = vadd.f32 0.0, %v2521
    %v2523 = vpop.f32.mrf.mxu0
    %v2524 = vadd.f32 0.0, %v2523
    %2525 = vmatmul.bf16.gmra.mxu0 %v2470
    %v2526 = vpop.f32.mrf.mxu0
    %v2527 = vadd.f32 0.0, %v2526
    %v2528 = vpop.f32.mrf.mxu0
    %v2529 = vadd.f32 0.0, %v2528
    %2530 = vmatmul.bf16.gmra.mxu0 %v2473
    %v2531 = vpop.f32.mrf.mxu0
    %v2532 = vadd.f32 0.0, %v2531
    %v2533 = vpop.f32.mrf.mxu0
    %v2534 = vadd.f32 0.0, %v2533
    %2535 = vmatmul.bf16.gmra.mxu0 %v2476
    %v2536 = vpop.f32.mrf.mxu0
    %v2537 = vadd.f32 0.0, %v2536
    %v2538 = vpop.f32.mrf.mxu0
    %v2539 = vadd.f32 0.0, %v2538
    %2540 = vmatmul.bf16.gmra.mxu0 %v2479
    %v2541 = vpop.f32.mrf.mxu0
    %v2542 = vadd.f32 0.0, %v2541
    %v2543 = vpop.f32.mrf.mxu0
    %v2544 = vadd.f32 0.0, %v2543
    %2545 = vmatmul.bf16.gmra.mxu0 %v2482
    %v2546 = vpop.f32.mrf.mxu0
    %v2547 = vadd.f32 0.0, %v2546
    %v2548 = vpop.f32.mrf.mxu0
    %v2549 = vadd.f32 0.0, %v2548
    %2550 = vmatmul.bf16.gmra.mxu0 %v2485
    %v2551 = vpop.f32.mrf.mxu0
    %v2552 = vadd.f32 0.0, %v2551
    %v2553 = vpop.f32.mrf.mxu0
    %v2554 = vadd.f32 0.0, %v2553
    %2555 = vdwg.mxu0
    %v2556 = vld [vmem:[#allocation15] sm:$0xff]
    %v2557 = vld [vmem:[#allocation15 + $0x8] sm:$0xff]
    %v2558 = vld [vmem:[#allocation15 + $0x10] sm:$0xff]
    %v2559 = vld [vmem:[#allocation15 + $0x18] sm:$0xff]
    %v2560 = vld [vmem:[#allocation15 + $0x20] sm:$0xff]
    %v2561 = vld [vmem:[#allocation15 + $0x28] sm:$0xff]
    %v2562 = vld [vmem:[#allocation15 + $0x30] sm:$0xff]
    %v2563 = vld [vmem:[#allocation15 + $0x38] sm:$0xff]
    %v2564 = vld [vmem:[#allocation15 + $0x40] sm:$0xff]
    %v2565 = vld [vmem:[#allocation15 + $0x48] sm:$0xff]
    %v2566 = vld [vmem:[#allocation15 + $0x50] sm:$0xff]
    %v2567 = vld [vmem:[#allocation15 + $0x58] sm:$0xff]
    %v2568 = vld [vmem:[#allocation15 + $0x60] sm:$0xff]
    %v2569 = vld [vmem:[#allocation15 + $0x68] sm:$0xff]
    %v2570 = vld [vmem:[#allocation15 + $0x70] sm:$0xff]
    %v2571 = vld [vmem:[#allocation15 + $0x78] sm:$0xff]
    %v2572 = vld [vmem:[#allocation15 + $0x80] sm:$0xff]
    %v2573 = vld [vmem:[#allocation15 + $0x88] sm:$0xff]
    %v2574 = vld [vmem:[#allocation15 + $0x90] sm:$0xff]
    %v2575 = vld [vmem:[#allocation15 + $0x98] sm:$0xff]
    %v2576 = vld [vmem:[#allocation15 + $0xa0] sm:$0xff]
    %v2577 = vld [vmem:[#allocation15 + $0xa8] sm:$0xff]
    %v2578 = vld [vmem:[#allocation15 + $0xb0] sm:$0xff]
    %v2579 = vld [vmem:[#allocation15 + $0xb8] sm:$0xff]
    %v2580 = vmul.f32 %v2497, %v2556
    %v2581 = vmul.f32 %v2499, %v2557
    %v2582 = vmul.f32 %v2502, %v2558
    %v2583 = vmul.f32 %v2504, %v2559
    %v2584 = vmul.f32 %v2507, %v2560
    %v2585 = vmul.f32 %v2509, %v2561
    %v2586 = vmul.f32 %v2512, %v2562
    %v2587 = vmul.f32 %v2514, %v2563
    %v2588 = vmul.f32 %v2517, %v2564
    %v2589 = vmul.f32 %v2519, %v2565
    %v2590 = vmul.f32 %v2522, %v2566
    %v2591 = vmul.f32 %v2524, %v2567
    %v2592 = vmul.f32 %v2527, %v2568
    %v2593 = vmul.f32 %v2529, %v2569
    %v2594 = vmul.f32 %v2532, %v2570
    %v2595 = vmul.f32 %v2534, %v2571
    %v2596 = vmul.f32 %v2537, %v2572
    %v2597 = vmul.f32 %v2539, %v2573
    %v2598 = vmul.f32 %v2542, %v2574
    %v2599 = vmul.f32 %v2544, %v2575
    %v2600 = vmul.f32 %v2547, %v2576
    %v2601 = vmul.f32 %v2549, %v2577
    %v2602 = vmul.f32 %v2552, %v2578
    %v2603 = vmul.f32 %v2554, %v2579
    %v2604 = vadd.f32 %v2580, %v2584
    %v2605 = vadd.f32 %v2581, %v2585
    %v2606 = vadd.f32 %v2582, %v2586
    %v2607 = vadd.f32 %v2583, %v2587
    %v2608 = vadd.f32 %v2604, %v2588
    %v2609 = vadd.f32 %v2605, %v2589
    %v2610 = vadd.f32 %v2606, %v2590
    %v2611 = vadd.f32 %v2607, %v2591
    %v2612 = vadd.f32 %v2608, %v2592
    %v2613 = vadd.f32 %v2609, %v2593
    %v2614 = vadd.f32 %v2610, %v2594
    %v2615 = vadd.f32 %v2611, %v2595
    %v2616 = vadd.f32 %v2612, %v2596
    %v2617 = vadd.f32 %v2613, %v2597
    %v2618 = vadd.f32 %v2614, %v2598
    %v2619 = vadd.f32 %v2615, %v2599
    %v2620 = vadd.f32 %v2616, %v2600
    %v2621 = vadd.f32 %v2617, %v2601
    %v2622 = vadd.f32 %v2618, %v2602
    %v2623 = vadd.f32 %v2619, %v2603
    %v2624 = vpack.c.bf16 %v2621, %v2620
    %v2625 = vpack.c.bf16 %v2623, %v2622
    %v2626 = vld [vmem:[#allocation16] sm:$0xf]
    %v2627 = vld [vmem:[#allocation16 + $0x4] sm:$0xf]
    %v2628 = vld [vmem:[#allocation16 + $0x8] sm:$0xf]
    %v2629 = vld [vmem:[#allocation16 + $0xc] sm:$0xf]
    %v2630 = vld [vmem:[#allocation16 + $0x10] sm:$0xf]
    %v2631 = vld [vmem:[#allocation16 + $0x14] sm:$0xf]
    %v2632 = vld [vmem:[#allocation16 + $0x18] sm:$0xf]
    %v2633 = vld [vmem:[#allocation16 + $0x1c] sm:$0xf]
    %v2634 = vld [vmem:[#allocation16 + $0x20] sm:$0xf]
    %v2635 = vld [vmem:[#allocation16 + $0x24] sm:$0xf]
    %v2636 = vld [vmem:[#allocation16 + $0x28] sm:$0xf]
    %v2637 = vld [vmem:[#allocation16 + $0x2c] sm:$0xf]
    %v2638 = vld [vmem:[#allocation16 + $0x30] sm:$0xf]
    %v2639 = vld [vmem:[#allocation16 + $0x34] sm:$0xf]
    %v2640 = vld [vmem:[#allocation16 + $0x38] sm:$0xf]
    %v2641 = vld [vmem:[#allocation16 + $0x3c] sm:$0xf]
    %v2658 = vunpack.c.l.b16 %v2626
    %v2659 = vunpack.c.l.b16 %v2627
    %v2660 = vunpack.c.l.b16 %v2628
    %v2661 = vunpack.c.l.b16 %v2629
    %v2662 = vunpack.c.l.b16 %v2630
    %v2663 = vunpack.c.l.b16 %v2631
    %v2664 = vunpack.c.l.b16 %v2632
    %v2665 = vunpack.c.l.b16 %v2633
    %v2666 = vunpack.c.l.b16 %v2634
    %v2667 = vunpack.c.l.b16 %v2635
    %v2668 = vunpack.c.l.b16 %v2636
    %v2669 = vunpack.c.l.b16 %v2637
    %v2670 = vunpack.c.l.b16 %v2638
    %v2671 = vunpack.c.l.b16 %v2639
    %v2672 = vunpack.c.l.b16 %v2640
    %v2673 = vunpack.c.l.b16 %v2641
    %v2674 = vpack.c.b16 %v2659, %v2658
    %v2675 = vpack.c.b16 %v2661, %v2660
    %v2676 = vpack.c.b16 %v2663, %v2662
    %v2677 = vpack.c.b16 %v2665, %v2664
    %v2678 = vpack.c.b16 %v2667, %v2666
    %v2679 = vpack.c.b16 %v2669, %v2668
    %v2680 = vpack.c.b16 %v2671, %v2670
    %v2681 = vpack.c.b16 %v2673, %v2672
    %2690 = vmatpush.bf16.msra.mxu0 %v2681
    %2691 = vmatpush.bf16.msra.mxu0 %v2680
    %2692 = vmatpush.bf16.msra.mxu0 %v2679
    %2693 = vmatpush.bf16.msra.mxu0 %v2678
    %2694 = vmatpush.bf16.msra.mxu0 %v2677
    %2695 = vmatpush.bf16.msra.mxu0 %v2676
    %2696 = vmatpush.bf16.msra.mxu0 %v2675
    %2697 = vmatpush.bf16.msra.mxu0 %v2674
    %2698 = vmatmul.bf16.gmra.mxu0 %v2624
    %v2699 = vpop.f32.mrf.mxu0
    %v2700 = vadd.f32 0.0, %v2699
    %v2701 = vpop.f32.mrf.mxu0
    %v2702 = vadd.f32 0.0, %v2701
    %2703 = vmatmul.bf16.gmra.mxu0 %v2625
    %v2704 = vpop.f32.mrf.mxu0
    %v2705 = vadd.f32 0.0, %v2704
    %v2706 = vpop.f32.mrf.mxu0
    %v2707 = vadd.f32 0.0, %v2706
    %2708 = vdwg.mxu0
    %v2709 = vmul.f32 %v2700, 0.16666667
    %v2710 = vmul.f32 %v2702, 0.16666667
    %v2711 = vmul.f32 %v2705, 0.16666667
    %v2712 = vmul.f32 %v2707, 0.16666667
    %v2713 = vadd.f32 %v2709, %v1868
    %v2714 = vadd.f32 %v2710, %v1870
    %v2715 = vadd.f32 %v2711, %v1873
    %v2716 = vadd.f32 %v2712, %v1875
    %v2717 = vld [vmem:[%s9] sm:$0x1]
    %v2719 = vperm.slane %v2717, 0
    %v2721 = vadd.f32 %v2713, %v2719
    %v2722 = vadd.f32 %v2714, %v2719
    %v2723 = vadd.f32 %v2715, %v2719
    %v2724 = vadd.f32 %v2716, %v2719
    %2725 = vst [vmem:[%s12] sm:$0xff] %v2721
    %2726 = vst [vmem:[%s12 + $0x8] sm:$0xff] %v2722
    %2727 = vst [vmem:[%s12 + $0x10] sm:$0xff] %v2723
    %2728 = vst [vmem:[%s12 + $0x18] sm:$0xff] %v2724
    // Predicated region
    $region90: #{net_forward.1} parent=1 // pred_check
      _
    $region91: #{net_forward.1} parent=1 // pred_check_branch
      %2730 = sbr.rel (0) target = $region93
    $region92: #{net_forward.1} parent=1 // pred_region
      _
    $region93: #{net_forward.1} parent=1 // pred_fallthru
      _
    // Predicated region
    $region94: #{net_forward.1} parent=1 // pred_check
      _
    $region95: #{net_forward.1} parent=1 // pred_check_branch
      %2732 = sbr.rel (0) target = $region97
    $region96: #{net_forward.1} parent=1 // pred_region
      _
    $region97: #{net_forward.1} parent=1 // pred_fallthru
      _
    %2733 = vsyncpa [#allocation3], 1
    %2734 = vsyncpa [#allocation5], 1
    %2735 = vsyncpa [#allocation8], 1
    %2736 = vsyncpa [#allocation11], 1
    %2737 = vsyncpa [#allocation14], 1
    %2738 = vsyncpa [#allocation17], 1

</llo_original>
